<compile_context>
chip_gen: v6e
topology: v6e:2x2x1
jax: 0.10.0
libtpu: 0.0.40
codegen_flags: <defaults>
</compile_context>

<pallas_src>
import functools
import math

import jax
import jax.numpy as jnp
from jax.experimental import pallas as pl
from jax.experimental.pallas import tpu as pltpu

PRIVILEGED_DIM = 9
ACTION_DIM = 2
HIDDEN = 256
STD_MIN = 0.01
STD_MAX = 1.0
LOGVAR_MIN = math.log(STD_MIN ** 2)   # 2*ln(0.01)
LOGVAR_MAX = math.log(STD_MAX ** 2)   # 0.0

# MXU-height batch tile: fine on v5e (4x128^2) and fills the 2x256^2 MXU on v6e/v7x.
TILE_B_MAX = 256


def _round_up(x, m):
    return (x + m - 1) // m * m


def _fast_mish(x):
    # mish(x) = x * tanh(softplus(x)) = x * n / (n + 2),  n = e^x (e^x + 2)
    # 2 EUP pushes (exp + approx reciprocal) instead of 3 (exp, log1p, tanh).
    xc = jnp.minimum(x, 20.0)                 # keep e*e from overflowing f32
    e = jnp.exp(xc)
    n = e * (e + 2.0)
    y = x * n * pl.reciprocal(n + 2.0, approx=True)
    return jnp.where(x > 20.0, x, y)          # mish(x) ~= x for large x


def _actor_kernel(x_ref,
                  w0_ref, b0_ref,            # Linear(9 -> 256)
                  w1_ref, b1_ref,            # residual block L1 (256 -> 256)
                  w2_ref, b2_ref,            # residual block L2 (256 -> 256)
                  w3_ref, b3_ref,            # Linear(256 -> 256)
                  wh_ref, bh_ref,            # fused [mean | logvar] head (256 -> 4)
                  out_ref):                  # packed [tile_b, 4] = [mean(2) | scale(2)]
    f32 = jnp.float32
    bf16 = jnp.bfloat16

    def dot(a, w_ref, b_ref):
        # bf16 x bf16 MXU pass, f32 accumulation, f32 bias add.
        return (jnp.dot(a.astype(bf16), w_ref[...], preferred_element_type=f32)
                + b_ref[...])

    x = x_ref[...]

    # ---- mlp_base ----
    h0 = dot(x, w0_ref, b0_ref)
    t = _fast_mish(h0)
    t = dot(t, w1_ref, b1_ref)
    t = _fast_mish(t)
    t = dot(t, w2_ref, b2_ref)
    h = t + h0                                    # pre-activation residual
    enc = _fast_mish(dot(h, w3_ref, b3_ref))      # out-activation = Mish

    # ---- fused heads: columns [0:2]=mean logits, [2:4]=logvar logits ----
    th = jnp.tanh(dot(enc, wh_ref, bh_ref))       # tanh_output + logvar tanh squash
    lv = LOGVAR_MIN + 0.5 * (LOGVAR_MAX - LOGVAR_MIN) * (th + 1.0)
    scale = jnp.exp(0.5 * lv)
    col = jax.lax.broadcasted_iota(jnp.int32, out_ref.shape, 1)
    out_ref[...] = jnp.where(col < ACTION_DIM, th, scale).astype(out_ref.dtype)


@functools.partial(jax.jit, static_argnames=("single_buffer_weights",))
def push_nn_privileged_actor(state, params, *, single_buffer_weights=True):
    """state: [B, 9] float32.  params: dict of f32 weights/biases.  Returns (mean, scale)."""
    B = state.shape[0]
    tile_b = min(TILE_B_MAX, _round_up(B, 8))
    b_pad = _round_up(B, tile_b)
    if b_pad != B:
        state = jnp.pad(state, ((0, b_pad - B), (0, 0)))

    bf16 = jnp.bfloat16
    w0 = params["w0"].astype(bf16); b0 = params["b0"]
    w1 = params["w1"].astype(bf16); b1 = params["b1"]
    w2 = params["w2"].astype(bf16); b2 = params["b2"]
    w3 = params["w3"].astype(bf16); b3 = params["b3"]
    # Fuse the two [256, 2] heads into one [256, 4] matmul.
    wh = jnp.concatenate([params["wm"], params["wv"]], axis=1).astype(bf16)
    bh = jnp.concatenate([params["bm"], params["bv"]], axis=1)

    grid = (b_pad // tile_b,)

    def const_spec(shape):
        # Constant block index -> resident in VMEM, never re-DMA'd across grid steps.
        kwargs = {}
        if single_buffer_weights:
            kwargs["pipeline_mode"] = pl.Buffered(1)   # no double buffer for static blocks
        return pl.BlockSpec(shape, lambda i: (0,) * len(shape), **kwargs)

    in_specs = [
        pl.BlockSpec((tile_b, PRIVILEGED_DIM), lambda i: (i, 0)),
        const_spec(w0.shape), const_spec(b0.shape),
        const_spec(w1.shape), const_spec(b1.shape),
        const_spec(w2.shape), const_spec(b2.shape),
        const_spec(w3.shape), const_spec(b3.shape),
        const_spec(wh.shape), const_spec(bh.shape),
    ]
    out_spec = pl.BlockSpec((tile_b, 2 * ACTION_DIM), lambda i: (i, 0))

    packed = pl.pallas_call(
        _actor_kernel,
        grid=grid,
        in_specs=in_specs,
        out_specs=out_spec,
        out_shape=jax.ShapeDtypeStruct((b_pad, 2 * ACTION_DIM), jnp.float32),
        compiler_params=pltpu.CompilerParams(
            dimension_semantics=("parallel",)),       # megacore sharding on v7x
    )(state, w0, b0, w1, b1, w2, b2, w3, b3, wh, bh)

    mean = packed[:B, :ACTION_DIM]
    scale = packed[:B, ACTION_DIM:]
    return mean, scale


# ------------------------- parameter init & pure-JAX reference -------------------------

def _init_params(key):
    """Deterministic synthetic parameters (PyTorch Linear init, stored as [in, out])."""
    def linear(key, fan_in, fan_out):
        kw, kb = jax.random.split(key)
        bound = 1.0 / math.sqrt(fan_in)
        w = jax.random.uniform(kw, (fan_in, fan_out), jnp.float32, -bound, bound)
        b = jax.random.uniform(kb, (1, fan_out), jnp.float32, -bound, bound)
        return w, b

    keys = jax.random.split(key, 6)
    p = {}
    p["w0"], p["b0"] = linear(keys[0], PRIVILEGED_DIM, HIDDEN)
    p["w1"], p["b1"] = linear(keys[1], HIDDEN, HIDDEN)
    p["w2"], p["b2"] = linear(keys[2], HIDDEN, HIDDEN)
    p["w3"], p["b3"] = linear(keys[3], HIDDEN, HIDDEN)
    p["wm"], p["bm"] = linear(keys[4], HIDDEN, ACTION_DIM)
    p["wv"], p["bv"] = linear(keys[5], HIDDEN, ACTION_DIM)
    return p


def _mish_exact(x):
    sp = jnp.where(x > 20.0, x, jnp.log1p(jnp.exp(jnp.minimum(x, 20.0))))
    return x * jnp.tanh(sp)


def _reference(state, p):
    """Exact f32 forward pass of the module (for correctness checking)."""
    h0 = state @ p["w0"] + p["b0"]
    t = _mish_exact(h0)
    t = t @ p["w1"] + p["b1"]
    t = _mish_exact(t)
    t = t @ p["w2"] + p["b2"]
    h = t + h0
    enc = _mish_exact(h @ p["w3"] + p["b3"])
    mean = jnp.tanh(enc @ p["wm"] + p["bm"])
    lv = jnp.tanh(enc @ p["wv"] + p["bv"])
    lv = LOGVAR_MIN + 0.5 * (LOGVAR_MAX - LOGVAR_MIN) * (lv + 1.0)
    return mean, jnp.exp(0.5 * lv)


if __name__ == "__main__":
    key = jax.random.PRNGKey(0)
    k_param, k_obs = jax.random.split(key)
    params = _init_params(k_param)

    # bf16 weights + approx-reciprocal mish => looser-than-f32 tolerance vs exact reference.
    ATOL = RTOL = 3e-2

    def check(B, single_buffer):
        k = jax.random.fold_in(k_obs, B)
        privileged = jax.random.normal(k, (B, PRIVILEGED_DIM), jnp.float32)
        mean, scale = jax.block_until_ready(
            push_nn_privileged_actor(privileged, params,
                                     single_buffer_weights=single_buffer))
        ref_mean, ref_scale = _reference(privileged, params)
        assert mean.shape == (B, ACTION_DIM) and scale.shape == (B, ACTION_DIM)
        assert jnp.allclose(mean, ref_mean, atol=ATOL, rtol=RTOL), \
            float(jnp.max(jnp.abs(mean - ref_mean)))
        assert jnp.allclose(scale, ref_scale, atol=ATOL, rtol=RTOL), \
            float(jnp.max(jnp.abs(scale - ref_scale)))

    # Probe pl.Buffered(1) on the weight specs; fall back to default double buffering
    # if this jax build rejects single-buffered operands.
    try:
        single_buffer = True
        check(8, single_buffer)
    except Exception:
        single_buffer = False
        check(8, single_buffer)

    # Small deployment batch (grid = 1 tile) and a multi-tile batch that exercises
    # the batch grid, padding, and the resident weight blocks.
    for B in (8, 640):
        check(B, single_buffer)

    print("KERNEL_OK")
</pallas_src>

<mosaic_0001>
module attributes {stable_mosaic.version = 11 : i64} {
  func.func @_actor_kernel(%arg0: i32, %arg1: memref<8x9xf32, #tpu.memory_space<vmem>>, %arg2: memref<9x256xbf16, #tpu.memory_space<vmem>>, %arg3: memref<1x256xf32, #tpu.memory_space<vmem>>, %arg4: memref<256x256xbf16, #tpu.memory_space<vmem>>, %arg5: memref<1x256xf32, #tpu.memory_space<vmem>>, %arg6: memref<256x256xbf16, #tpu.memory_space<vmem>>, %arg7: memref<1x256xf32, #tpu.memory_space<vmem>>, %arg8: memref<256x256xbf16, #tpu.memory_space<vmem>>, %arg9: memref<1x256xf32, #tpu.memory_space<vmem>>, %arg10: memref<256x4xbf16, #tpu.memory_space<vmem>>, %arg11: memref<1x4xf32, #tpu.memory_space<vmem>>, %arg12: memref<8x4xf32, #tpu.memory_space<vmem>>) attributes {dimension_semantics = [#tpu.dimension_semantics<parallel>], iteration_bounds = array<i64: 1>, scalar_prefetch = 0 : i64, scratch_operands = 0 : i64, tpu.core_type = #tpu.core_type<tc>, window_params = [{transform_indices = @transform_0, window_bounds = array<i64: 8, 9>}, {pipeline_mode = #tpu.pipeline_mode<synchronous>, transform_indices = @transform_1, window_bounds = array<i64: 9, 256>}, {pipeline_mode = #tpu.pipeline_mode<synchronous>, transform_indices = @transform_2, window_bounds = array<i64: 1, 256>}, {pipeline_mode = #tpu.pipeline_mode<synchronous>, transform_indices = @transform_3, window_bounds = array<i64: 256, 256>}, {pipeline_mode = #tpu.pipeline_mode<synchronous>, transform_indices = @transform_4, window_bounds = array<i64: 1, 256>}, {pipeline_mode = #tpu.pipeline_mode<synchronous>, transform_indices = @transform_5, window_bounds = array<i64: 256, 256>}, {pipeline_mode = #tpu.pipeline_mode<synchronous>, transform_indices = @transform_6, window_bounds = array<i64: 1, 256>}, {pipeline_mode = #tpu.pipeline_mode<synchronous>, transform_indices = @transform_7, window_bounds = array<i64: 256, 256>}, {pipeline_mode = #tpu.pipeline_mode<synchronous>, transform_indices = @transform_8, window_bounds = array<i64: 1, 256>}, {pipeline_mode = #tpu.pipeline_mode<synchronous>, transform_indices = @transform_9, window_bounds = array<i64: 256, 4>}, {pipeline_mode = #tpu.pipeline_mode<synchronous>, transform_indices = @transform_10, window_bounds = array<i64: 1, 4>}, {transform_indices = @transform_11, window_bounds = array<i64: 8, 4>}]} {
    %c0 = arith.constant 0 : index
    %c0_0 = arith.constant 0 : index
    %0 = vector.load %arg1[%c0, %c0_0] : memref<8x9xf32, #tpu.memory_space<vmem>>, vector<8x9xf32>
    %1 = arith.truncf %0 : vector<8x9xf32> to vector<8x9xbf16>
    %c0_1 = arith.constant 0 : index
    %c0_2 = arith.constant 0 : index
    %2 = vector.load %arg2[%c0_1, %c0_2] : memref<9x256xbf16, #tpu.memory_space<vmem>>, vector<9x256xbf16>
    %cst = arith.constant dense<0.000000e+00> : vector<8x256xf32>
    %3 = tpu.matmul %1, %2, %cst {dimension_numbers = #tpu.dot_dimension_numbers<[1], [0], [0], [1], [0, 0, 1, 1], [], []>} : vector<8x9xbf16>, vector<9x256xbf16>, vector<8x256xf32> -> vector<8x256xf32>
    %c0_3 = arith.constant 0 : index
    %c0_4 = arith.constant 0 : index
    %4 = vector.load %arg3[%c0_3, %c0_4] : memref<1x256xf32, #tpu.memory_space<vmem>>, vector<1x256xf32>
    %5 = vector.broadcast %4 : vector<1x256xf32> to vector<8x256xf32>
    %6 = arith.addf %3, %5 : vector<8x256xf32>
    %cst_5 = arith.constant 2.000000e+01 : f32
    %7 = vector.broadcast %cst_5 : f32 to vector<8x256xf32>
    %8 = arith.minimumf %6, %7 : vector<8x256xf32>
    %9 = math.exp %8 : vector<8x256xf32>
    %cst_6 = arith.constant 2.000000e+00 : f32
    %10 = vector.broadcast %cst_6 : f32 to vector<8x256xf32>
    %11 = arith.addf %9, %10 : vector<8x256xf32>
    %12 = arith.mulf %9, %11 : vector<8x256xf32>
    %13 = arith.mulf %6, %12 : vector<8x256xf32>
    %cst_7 = arith.constant 2.000000e+00 : f32
    %14 = vector.broadcast %cst_7 : f32 to vector<8x256xf32>
    %15 = arith.addf %12, %14 : vector<8x256xf32>
    %16 = tpu.reciprocal %15 {approx = true} : vector<8x256xf32> -> vector<8x256xf32>
    %17 = arith.mulf %13, %16 : vector<8x256xf32>
    %cst_8 = arith.constant 2.000000e+01 : f32
    %18 = vector.broadcast %cst_8 : f32 to vector<8x256xf32>
    %19 = arith.cmpf ogt, %6, %18 : vector<8x256xf32>
    %20 = arith.select %19, %6, %17 : vector<8x256xi1>, vector<8x256xf32>
    %21 = arith.truncf %20 : vector<8x256xf32> to vector<8x256xbf16>
    %c0_9 = arith.constant 0 : index
    %c0_10 = arith.constant 0 : index
    %22 = vector.load %arg4[%c0_9, %c0_10] : memref<256x256xbf16, #tpu.memory_space<vmem>>, vector<256x256xbf16>
    %cst_11 = arith.constant dense<0.000000e+00> : vector<8x256xf32>
    %23 = tpu.matmul %21, %22, %cst_11 {dimension_numbers = #tpu.dot_dimension_numbers<[1], [0], [0], [1], [0, 0, 1, 1], [], []>} : vector<8x256xbf16>, vector<256x256xbf16>, vector<8x256xf32> -> vector<8x256xf32>
    %c0_12 = arith.constant 0 : index
    %c0_13 = arith.constant 0 : index
    %24 = vector.load %arg5[%c0_12, %c0_13] : memref<1x256xf32, #tpu.memory_space<vmem>>, vector<1x256xf32>
    %25 = vector.broadcast %24 : vector<1x256xf32> to vector<8x256xf32>
    %26 = arith.addf %23, %25 : vector<8x256xf32>
    %cst_14 = arith.constant 2.000000e+01 : f32
    %27 = vector.broadcast %cst_14 : f32 to vector<8x256xf32>
    %28 = arith.minimumf %26, %27 : vector<8x256xf32>
    %29 = math.exp %28 : vector<8x256xf32>
    %cst_15 = arith.constant 2.000000e+00 : f32
    %30 = vector.broadcast %cst_15 : f32 to vector<8x256xf32>
    %31 = arith.addf %29, %30 : vector<8x256xf32>
    %32 = arith.mulf %29, %31 : vector<8x256xf32>
    %33 = arith.mulf %26, %32 : vector<8x256xf32>
    %cst_16 = arith.constant 2.000000e+00 : f32
    %34 = vector.broadcast %cst_16 : f32 to vector<8x256xf32>
    %35 = arith.addf %32, %34 : vector<8x256xf32>
    %36 = tpu.reciprocal %35 {approx = true} : vector<8x256xf32> -> vector<8x256xf32>
    %37 = arith.mulf %33, %36 : vector<8x256xf32>
    %cst_17 = arith.constant 2.000000e+01 : f32
    %38 = vector.broadcast %cst_17 : f32 to vector<8x256xf32>
    %39 = arith.cmpf ogt, %26, %38 : vector<8x256xf32>
    %40 = arith.select %39, %26, %37 : vector<8x256xi1>, vector<8x256xf32>
    %41 = arith.truncf %40 : vector<8x256xf32> to vector<8x256xbf16>
    %c0_18 = arith.constant 0 : index
    %c0_19 = arith.constant 0 : index
    %42 = vector.load %arg6[%c0_18, %c0_19] : memref<256x256xbf16, #tpu.memory_space<vmem>>, vector<256x256xbf16>
    %cst_20 = arith.constant dense<0.000000e+00> : vector<8x256xf32>
    %43 = tpu.matmul %41, %42, %cst_20 {dimension_numbers = #tpu.dot_dimension_numbers<[1], [0], [0], [1], [0, 0, 1, 1], [], []>} : vector<8x256xbf16>, vector<256x256xbf16>, vector<8x256xf32> -> vector<8x256xf32>
    %c0_21 = arith.constant 0 : index
    %c0_22 = arith.constant 0 : index
    %44 = vector.load %arg7[%c0_21, %c0_22] : memref<1x256xf32, #tpu.memory_space<vmem>>, vector<1x256xf32>
    %45 = vector.broadcast %44 : vector<1x256xf32> to vector<8x256xf32>
    %46 = arith.addf %43, %45 : vector<8x256xf32>
    %47 = arith.addf %46, %6 : vector<8x256xf32>
    %48 = arith.truncf %47 : vector<8x256xf32> to vector<8x256xbf16>
    %c0_23 = arith.constant 0 : index
    %c0_24 = arith.constant 0 : index
    %49 = vector.load %arg8[%c0_23, %c0_24] : memref<256x256xbf16, #tpu.memory_space<vmem>>, vector<256x256xbf16>
    %cst_25 = arith.constant dense<0.000000e+00> : vector<8x256xf32>
    %50 = tpu.matmul %48, %49, %cst_25 {dimension_numbers = #tpu.dot_dimension_numbers<[1], [0], [0], [1], [0, 0, 1, 1], [], []>} : vector<8x256xbf16>, vector<256x256xbf16>, vector<8x256xf32> -> vector<8x256xf32>
    %c0_26 = arith.constant 0 : index
    %c0_27 = arith.constant 0 : index
    %51 = vector.load %arg9[%c0_26, %c0_27] : memref<1x256xf32, #tpu.memory_space<vmem>>, vector<1x256xf32>
    %52 = vector.broadcast %51 : vector<1x256xf32> to vector<8x256xf32>
    %53 = arith.addf %50, %52 : vector<8x256xf32>
    %cst_28 = arith.constant 2.000000e+01 : f32
    %54 = vector.broadcast %cst_28 : f32 to vector<8x256xf32>
    %55 = arith.minimumf %53, %54 : vector<8x256xf32>
    %56 = math.exp %55 : vector<8x256xf32>
    %cst_29 = arith.constant 2.000000e+00 : f32
    %57 = vector.broadcast %cst_29 : f32 to vector<8x256xf32>
    %58 = arith.addf %56, %57 : vector<8x256xf32>
    %59 = arith.mulf %56, %58 : vector<8x256xf32>
    %60 = arith.mulf %53, %59 : vector<8x256xf32>
    %cst_30 = arith.constant 2.000000e+00 : f32
    %61 = vector.broadcast %cst_30 : f32 to vector<8x256xf32>
    %62 = arith.addf %59, %61 : vector<8x256xf32>
    %63 = tpu.reciprocal %62 {approx = true} : vector<8x256xf32> -> vector<8x256xf32>
    %64 = arith.mulf %60, %63 : vector<8x256xf32>
    %cst_31 = arith.constant 2.000000e+01 : f32
    %65 = vector.broadcast %cst_31 : f32 to vector<8x256xf32>
    %66 = arith.cmpf ogt, %53, %65 : vector<8x256xf32>
    %67 = arith.select %66, %53, %64 : vector<8x256xi1>, vector<8x256xf32>
    %68 = arith.truncf %67 : vector<8x256xf32> to vector<8x256xbf16>
    %c0_32 = arith.constant 0 : index
    %c0_33 = arith.constant 0 : index
    %69 = vector.load %arg10[%c0_32, %c0_33] : memref<256x4xbf16, #tpu.memory_space<vmem>>, vector<256x4xbf16>
    %cst_34 = arith.constant dense<0.000000e+00> : vector<8x4xf32>
    %70 = tpu.matmul %68, %69, %cst_34 {dimension_numbers = #tpu.dot_dimension_numbers<[1], [0], [0], [1], [0, 0, 1, 1], [], []>} : vector<8x256xbf16>, vector<256x4xbf16>, vector<8x4xf32> -> vector<8x4xf32>
    %c0_35 = arith.constant 0 : index
    %c0_36 = arith.constant 0 : index
    %71 = vector.load %arg11[%c0_35, %c0_36] : memref<1x4xf32, #tpu.memory_space<vmem>>, vector<1x4xf32>
    %72 = vector.broadcast %71 : vector<1x4xf32> to vector<8x4xf32>
    %73 = arith.addf %70, %72 : vector<8x4xf32>
    %74 = math.tanh %73 : vector<8x4xf32>
    %cst_37 = arith.constant 1.000000e+00 : f32
    %75 = vector.broadcast %cst_37 : f32 to vector<8x4xf32>
    %76 = arith.addf %74, %75 : vector<8x4xf32>
    %cst_38 = arith.constant 4.60517025 : f32
    %77 = vector.broadcast %cst_38 : f32 to vector<8x4xf32>
    %78 = arith.mulf %77, %76 : vector<8x4xf32>
    %cst_39 = arith.constant -9.21034049 : f32
    %79 = vector.broadcast %cst_39 : f32 to vector<8x4xf32>
    %80 = arith.addf %79, %78 : vector<8x4xf32>
    %cst_40 = arith.constant 5.000000e-01 : f32
    %81 = vector.broadcast %cst_40 : f32 to vector<8x4xf32>
    %82 = arith.mulf %81, %80 : vector<8x4xf32>
    %83 = math.exp %82 : vector<8x4xf32>
    %84 = tpu.iota {dimensions = array<i32: 1>} : vector<8x4xi32>
    %c2_i32 = arith.constant 2 : i32
    %85 = vector.broadcast %c2_i32 : i32 to vector<8x4xi32>
    %86 = arith.cmpi slt, %84, %85 : vector<8x4xi32>
    %87 = arith.select %86, %74, %83 : vector<8x4xi1>, vector<8x4xf32>
    %c0_41 = arith.constant 0 : index
    %c0_42 = arith.constant 0 : index
    %88 = vector.load %arg12[%c0_41, %c0_42] : memref<8x4xf32, #tpu.memory_space<vmem>>, vector<8x4xf32>
    tpu.vector_store %arg12[%c0_41, %c0_42], %87 {strides = array<i32>} : memref<8x4xf32, #tpu.memory_space<vmem>>, vector<8x4xf32>,
    return
  }
  func.func @transform_0(%arg0: i32) -> (i32, i32) {
    %c0_i32 = arith.constant 0 : i32
    %c0_i32_0 = arith.constant 0 : i32
    return %arg0, %c0_i32 : i32, i32
  }
  func.func @transform_1(%arg0: i32) -> (i32, i32) {
    %c0_i32 = arith.constant 0 : i32
    %c0_i32_0 = arith.constant 0 : i32
    %c0_i32_1 = arith.constant 0 : i32
    return %c0_i32, %c0_i32_0 : i32, i32
  }
  func.func @transform_2(%arg0: i32) -> (i32, i32) {
    %c0_i32 = arith.constant 0 : i32
    %c0_i32_0 = arith.constant 0 : i32
    %c0_i32_1 = arith.constant 0 : i32
    return %c0_i32, %c0_i32_0 : i32, i32
  }
  func.func @transform_3(%arg0: i32) -> (i32, i32) {
    %c0_i32 = arith.constant 0 : i32
    %c0_i32_0 = arith.constant 0 : i32
    %c0_i32_1 = arith.constant 0 : i32
    return %c0_i32, %c0_i32_0 : i32, i32
  }
  func.func @transform_4(%arg0: i32) -> (i32, i32) {
    %c0_i32 = arith.constant 0 : i32
    %c0_i32_0 = arith.constant 0 : i32
    %c0_i32_1 = arith.constant 0 : i32
    return %c0_i32, %c0_i32_0 : i32, i32
  }
  func.func @transform_5(%arg0: i32) -> (i32, i32) {
    %c0_i32 = arith.constant 0 : i32
    %c0_i32_0 = arith.constant 0 : i32
    %c0_i32_1 = arith.constant 0 : i32
    return %c0_i32, %c0_i32_0 : i32, i32
  }
  func.func @transform_6(%arg0: i32) -> (i32, i32) {
    %c0_i32 = arith.constant 0 : i32
    %c0_i32_0 = arith.constant 0 : i32
    %c0_i32_1 = arith.constant 0 : i32
    return %c0_i32, %c0_i32_0 : i32, i32
  }
  func.func @transform_7(%arg0: i32) -> (i32, i32) {
    %c0_i32 = arith.constant 0 : i32
    %c0_i32_0 = arith.constant 0 : i32
    %c0_i32_1 = arith.constant 0 : i32
    return %c0_i32, %c0_i32_0 : i32, i32
  }
  func.func @transform_8(%arg0: i32) -> (i32, i32) {
    %c0_i32 = arith.constant 0 : i32
    %c0_i32_0 = arith.constant 0 : i32
    %c0_i32_1 = arith.constant 0 : i32
    return %c0_i32, %c0_i32_0 : i32, i32
  }
  func.func @transform_9(%arg0: i32) -> (i32, i32) {
    %c0_i32 = arith.constant 0 : i32
    %c0_i32_0 = arith.constant 0 : i32
    %c0_i32_1 = arith.constant 0 : i32
    return %c0_i32, %c0_i32_0 : i32, i32
  }
  func.func @transform_10(%arg0: i32) -> (i32, i32) {
    %c0_i32 = arith.constant 0 : i32
    %c0_i32_0 = arith.constant 0 : i32
    %c0_i32_1 = arith.constant 0 : i32
    return %c0_i32, %c0_i32_0 : i32, i32
  }
  func.func @transform_11(%arg0: i32) -> (i32, i32) {
    %c0_i32 = arith.constant 0 : i32
    %c0_i32_0 = arith.constant 0 : i32
    return %arg0, %c0_i32 : i32, i32
  }
}

module attributes {stable_mosaic.version = 11 : i64} {
  func.func @_actor_kernel(%arg0: i32, %arg1: memref<8x9xf32, #tpu.memory_space<vmem>>, %arg2: memref<9x256xbf16, #tpu.memory_space<vmem>>, %arg3: memref<1x256xf32, #tpu.memory_space<vmem>>, %arg4: memref<256x256xbf16, #tpu.memory_space<vmem>>, %arg5: memref<1x256xf32, #tpu.memory_space<vmem>>, %arg6: memref<256x256xbf16, #tpu.memory_space<vmem>>, %arg7: memref<1x256xf32, #tpu.memory_space<vmem>>, %arg8: memref<256x256xbf16, #tpu.memory_space<vmem>>, %arg9: memref<1x256xf32, #tpu.memory_space<vmem>>, %arg10: memref<256x4xbf16, #tpu.memory_space<vmem>>, %arg11: memref<1x4xf32, #tpu.memory_space<vmem>>, %arg12: memref<8x4xf32, #tpu.memory_space<vmem>>) attributes {dimension_semantics = [#tpu.dimension_semantics<parallel>], iteration_bounds = array<i64: 1>, scalar_prefetch = 0 : i64, scratch_operands = 0 : i64, tpu.core_type = #tpu.core_type<tc>, window_params = [{transform_indices = @transform_0, window_bounds = array<i64: 8, 9>}, {pipeline_mode = #tpu.pipeline_mode<synchronous>, transform_indices = @transform_1, window_bounds = array<i64: 9, 256>}, {pipeline_mode = #tpu.pipeline_mode<synchronous>, transform_indices = @transform_2, window_bounds = array<i64: 1, 256>}, {pipeline_mode = #tpu.pipeline_mode<synchronous>, transform_indices = @transform_3, window_bounds = array<i64: 256, 256>}, {pipeline_mode = #tpu.pipeline_mode<synchronous>, transform_indices = @transform_4, window_bounds = array<i64: 1, 256>}, {pipeline_mode = #tpu.pipeline_mode<synchronous>, transform_indices = @transform_5, window_bounds = array<i64: 256, 256>}, {pipeline_mode = #tpu.pipeline_mode<synchronous>, transform_indices = @transform_6, window_bounds = array<i64: 1, 256>}, {pipeline_mode = #tpu.pipeline_mode<synchronous>, transform_indices = @transform_7, window_bounds = array<i64: 256, 256>}, {pipeline_mode = #tpu.pipeline_mode<synchronous>, transform_indices = @transform_8, window_bounds = array<i64: 1, 256>}, {pipeline_mode = #tpu.pipeline_mode<synchronous>, transform_indices = @transform_9, window_bounds = array<i64: 256, 4>}, {pipeline_mode = #tpu.pipeline_mode<synchronous>, transform_indices = @transform_10, window_bounds = array<i64: 1, 4>}, {transform_indices = @transform_11, window_bounds = array<i64: 8, 4>}]} {
    %c0 = arith.constant 0 : index
    %c0_0 = arith.constant 0 : index
    %0 = vector.load %arg1[%c0, %c0_0] : memref<8x9xf32, #tpu.memory_space<vmem>>, vector<8x9xf32>
    %1 = arith.truncf %0 : vector<8x9xf32> to vector<8x9xbf16>
    %c0_1 = arith.constant 0 : index
    %c0_2 = arith.constant 0 : index
    %2 = vector.load %arg2[%c0_1, %c0_2] : memref<9x256xbf16, #tpu.memory_space<vmem>>, vector<9x256xbf16>
    %cst = arith.constant dense<0.000000e+00> : vector<8x256xf32>
    %3 = tpu.matmul %1, %2, %cst {dimension_numbers = #tpu.dot_dimension_numbers<[1], [0], [0], [1], [0, 0, 1, 1], [], []>} : vector<8x9xbf16>, vector<9x256xbf16>, vector<8x256xf32> -> vector<8x256xf32>
    %c0_3 = arith.constant 0 : index
    %c0_4 = arith.constant 0 : index
    %4 = vector.load %arg3[%c0_3, %c0_4] : memref<1x256xf32, #tpu.memory_space<vmem>>, vector<1x256xf32>
    %5 = vector.broadcast %4 : vector<1x256xf32> to vector<8x256xf32>
    %6 = arith.addf %3, %5 : vector<8x256xf32>
    %cst_5 = arith.constant 2.000000e+01 : f32
    %7 = vector.broadcast %cst_5 : f32 to vector<8x256xf32>
    %8 = arith.minimumf %6, %7 : vector<8x256xf32>
    %9 = math.exp %8 : vector<8x256xf32>
    %cst_6 = arith.constant 2.000000e+00 : f32
    %10 = vector.broadcast %cst_6 : f32 to vector<8x256xf32>
    %11 = arith.addf %9, %10 : vector<8x256xf32>
    %12 = arith.mulf %9, %11 : vector<8x256xf32>
    %13 = arith.mulf %6, %12 : vector<8x256xf32>
    %cst_7 = arith.constant 2.000000e+00 : f32
    %14 = vector.broadcast %cst_7 : f32 to vector<8x256xf32>
    %15 = arith.addf %12, %14 : vector<8x256xf32>
    %16 = tpu.reciprocal %15 {approx = true} : vector<8x256xf32> -> vector<8x256xf32>
    %17 = arith.mulf %13, %16 : vector<8x256xf32>
    %cst_8 = arith.constant 2.000000e+01 : f32
    %18 = vector.broadcast %cst_8 : f32 to vector<8x256xf32>
    %19 = arith.cmpf ogt, %6, %18 : vector<8x256xf32>
    %20 = arith.select %19, %6, %17 : vector<8x256xi1>, vector<8x256xf32>
    %21 = arith.truncf %20 : vector<8x256xf32> to vector<8x256xbf16>
    %c0_9 = arith.constant 0 : index
    %c0_10 = arith.constant 0 : index
    %22 = vector.load %arg4[%c0_9, %c0_10] : memref<256x256xbf16, #tpu.memory_space<vmem>>, vector<256x256xbf16>
    %cst_11 = arith.constant dense<0.000000e+00> : vector<8x256xf32>
    %23 = tpu.matmul %21, %22, %cst_11 {dimension_numbers = #tpu.dot_dimension_numbers<[1], [0], [0], [1], [0, 0, 1, 1], [], []>} : vector<8x256xbf16>, vector<256x256xbf16>, vector<8x256xf32> -> vector<8x256xf32>
    %c0_12 = arith.constant 0 : index
    %c0_13 = arith.constant 0 : index
    %24 = vector.load %arg5[%c0_12, %c0_13] : memref<1x256xf32, #tpu.memory_space<vmem>>, vector<1x256xf32>
    %25 = vector.broadcast %24 : vector<1x256xf32> to vector<8x256xf32>
    %26 = arith.addf %23, %25 : vector<8x256xf32>
    %cst_14 = arith.constant 2.000000e+01 : f32
    %27 = vector.broadcast %cst_14 : f32 to vector<8x256xf32>
    %28 = arith.minimumf %26, %27 : vector<8x256xf32>
    %29 = math.exp %28 : vector<8x256xf32>
    %cst_15 = arith.constant 2.000000e+00 : f32
    %30 = vector.broadcast %cst_15 : f32 to vector<8x256xf32>
    %31 = arith.addf %29, %30 : vector<8x256xf32>
    %32 = arith.mulf %29, %31 : vector<8x256xf32>
    %33 = arith.mulf %26, %32 : vector<8x256xf32>
    %cst_16 = arith.constant 2.000000e+00 : f32
    %34 = vector.broadcast %cst_16 : f32 to vector<8x256xf32>
    %35 = arith.addf %32, %34 : vector<8x256xf32>
    %36 = tpu.reciprocal %35 {approx = true} : vector<8x256xf32> -> vector<8x256xf32>
    %37 = arith.mulf %33, %36 : vector<8x256xf32>
    %cst_17 = arith.constant 2.000000e+01 : f32
    %38 = vector.broadcast %cst_17 : f32 to vector<8x256xf32>
    %39 = arith.cmpf ogt, %26, %38 : vector<8x256xf32>
    %40 = arith.select %39, %26, %37 : vector<8x256xi1>, vector<8x256xf32>
    %41 = arith.truncf %40 : vector<8x256xf32> to vector<8x256xbf16>
    %c0_18 = arith.constant 0 : index
    %c0_19 = arith.constant 0 : index
    %42 = vector.load %arg6[%c0_18, %c0_19] : memref<256x256xbf16, #tpu.memory_space<vmem>>, vector<256x256xbf16>
    %cst_20 = arith.constant dense<0.000000e+00> : vector<8x256xf32>
    %43 = tpu.matmul %41, %42, %cst_20 {dimension_numbers = #tpu.dot_dimension_numbers<[1], [0], [0], [1], [0, 0, 1, 1], [], []>} : vector<8x256xbf16>, vector<256x256xbf16>, vector<8x256xf32> -> vector<8x256xf32>
    %c0_21 = arith.constant 0 : index
    %c0_22 = arith.constant 0 : index
    %44 = vector.load %arg7[%c0_21, %c0_22] : memref<1x256xf32, #tpu.memory_space<vmem>>, vector<1x256xf32>
    %45 = vector.broadcast %44 : vector<1x256xf32> to vector<8x256xf32>
    %46 = arith.addf %43, %45 : vector<8x256xf32>
    %47 = arith.addf %46, %6 : vector<8x256xf32>
    %48 = arith.truncf %47 : vector<8x256xf32> to vector<8x256xbf16>
    %c0_23 = arith.constant 0 : index
    %c0_24 = arith.constant 0 : index
    %49 = vector.load %arg8[%c0_23, %c0_24] : memref<256x256xbf16, #tpu.memory_space<vmem>>, vector<256x256xbf16>
    %cst_25 = arith.constant dense<0.000000e+00> : vector<8x256xf32>
    %50 = tpu.matmul %48, %49, %cst_25 {dimension_numbers = #tpu.dot_dimension_numbers<[1], [0], [0], [1], [0, 0, 1, 1], [], []>} : vector<8x256xbf16>, vector<256x256xbf16>, vector<8x256xf32> -> vector<8x256xf32>
    %c0_26 = arith.constant 0 : index
    %c0_27 = arith.constant 0 : index
    %51 = vector.load %arg9[%c0_26, %c0_27] : memref<1x256xf32, #tpu.memory_space<vmem>>, vector<1x256xf32>
    %52 = vector.broadcast %51 : vector<1x256xf32> to vector<8x256xf32>
    %53 = arith.addf %50, %52 : vector<8x256xf32>
    %cst_28 = arith.constant 2.000000e+01 : f32
    %54 = vector.broadcast %cst_28 : f32 to vector<8x256xf32>
    %55 = arith.minimumf %53, %54 : vector<8x256xf32>
    %56 = math.exp %55 : vector<8x256xf32>
    %cst_29 = arith.constant 2.000000e+00 : f32
    %57 = vector.broadcast %cst_29 : f32 to vector<8x256xf32>
    %58 = arith.addf %56, %57 : vector<8x256xf32>
    %59 = arith.mulf %56, %58 : vector<8x256xf32>
    %60 = arith.mulf %53, %59 : vector<8x256xf32>
    %cst_30 = arith.constant 2.000000e+00 : f32
    %61 = vector.broadcast %cst_30 : f32 to vector<8x256xf32>
    %62 = arith.addf %59, %61 : vector<8x256xf32>
    %63 = tpu.reciprocal %62 {approx = true} : vector<8x256xf32> -> vector<8x256xf32>
    %64 = arith.mulf %60, %63 : vector<8x256xf32>
    %cst_31 = arith.constant 2.000000e+01 : f32
    %65 = vector.broadcast %cst_31 : f32 to vector<8x256xf32>
    %66 = arith.cmpf ogt, %53, %65 : vector<8x256xf32>
    %67 = arith.select %66, %53, %64 : vector<8x256xi1>, vector<8x256xf32>
    %68 = arith.truncf %67 : vector<8x256xf32> to vector<8x256xbf16>
    %c0_32 = arith.constant 0 : index
    %c0_33 = arith.constant 0 : index
    %69 = vector.load %arg10[%c0_32, %c0_33] : memref<256x4xbf16, #tpu.memory_space<vmem>>, vector<256x4xbf16>
    %cst_34 = arith.constant dense<0.000000e+00> : vector<8x4xf32>
    %70 = tpu.matmul %68, %69, %cst_34 {dimension_numbers = #tpu.dot_dimension_numbers<[1], [0], [0], [1], [0, 0, 1, 1], [], []>} : vector<8x256xbf16>, vector<256x4xbf16>, vector<8x4xf32> -> vector<8x4xf32>
    %c0_35 = arith.constant 0 : index
    %c0_36 = arith.constant 0 : index
    %71 = vector.load %arg11[%c0_35, %c0_36] : memref<1x4xf32, #tpu.memory_space<vmem>>, vector<1x4xf32>
    %72 = vector.broadcast %71 : vector<1x4xf32> to vector<8x4xf32>
    %73 = arith.addf %70, %72 : vector<8x4xf32>
    %74 = math.tanh %73 : vector<8x4xf32>
    %cst_37 = arith.constant 1.000000e+00 : f32
    %75 = vector.broadcast %cst_37 : f32 to vector<8x4xf32>
    %76 = arith.addf %74, %75 : vector<8x4xf32>
    %cst_38 = arith.constant 4.60517025 : f32
    %77 = vector.broadcast %cst_38 : f32 to vector<8x4xf32>
    %78 = arith.mulf %77, %76 : vector<8x4xf32>
    %cst_39 = arith.constant -9.21034049 : f32
    %79 = vector.broadcast %cst_39 : f32 to vector<8x4xf32>
    %80 = arith.addf %79, %78 : vector<8x4xf32>
    %cst_40 = arith.constant 5.000000e-01 : f32
    %81 = vector.broadcast %cst_40 : f32 to vector<8x4xf32>
    %82 = arith.mulf %81, %80 : vector<8x4xf32>
    %83 = math.exp %82 : vector<8x4xf32>
    %84 = tpu.iota {dimensions = array<i32: 1>} : vector<8x4xi32>
    %c2_i32 = arith.constant 2 : i32
    %85 = vector.broadcast %c2_i32 : i32 to vector<8x4xi32>
    %86 = arith.cmpi slt, %84, %85 : vector<8x4xi32>
    %87 = arith.select %86, %74, %83 : vector<8x4xi1>, vector<8x4xf32>
    %c0_41 = arith.constant 0 : index
    %c0_42 = arith.constant 0 : index
    %88 = vector.load %arg12[%c0_41, %c0_42] : memref<8x4xf32, #tpu.memory_space<vmem>>, vector<8x4xf32>
    tpu.vector_store %arg12[%c0_41, %c0_42], %87 {strides = array<i32>} : memref<8x4xf32, #tpu.memory_space<vmem>>, vector<8x4xf32>,
    return
  }
  func.func @transform_0(%arg0: i32) -> (i32, i32) {
    %c0_i32 = arith.constant 0 : i32
    %c0_i32_0 = arith.constant 0 : i32
    return %arg0, %c0_i32 : i32, i32
  }
  func.func @transform_1(%arg0: i32) -> (i32, i32) {
    %c0_i32 = arith.constant 0 : i32
    %c0_i32_0 = arith.constant 0 : i32
    %c0_i32_1 = arith.constant 0 : i32
    return %c0_i32, %c0_i32_0 : i32, i32
  }
  func.func @transform_2(%arg0: i32) -> (i32, i32) {
    %c0_i32 = arith.constant 0 : i32
    %c0_i32_0 = arith.constant 0 : i32
    %c0_i32_1 = arith.constant 0 : i32
    return %c0_i32, %c0_i32_0 : i32, i32
  }
  func.func @transform_3(%arg0: i32) -> (i32, i32) {
    %c0_i32 = arith.constant 0 : i32
    %c0_i32_0 = arith.constant 0 : i32
    %c0_i32_1 = arith.constant 0 : i32
    return %c0_i32, %c0_i32_0 : i32, i32
  }
  func.func @transform_4(%arg0: i32) -> (i32, i32) {
    %c0_i32 = arith.constant 0 : i32
    %c0_i32_0 = arith.constant 0 : i32
    %c0_i32_1 = arith.constant 0 : i32
    return %c0_i32, %c0_i32_0 : i32, i32
  }
  func.func @transform_5(%arg0: i32) -> (i32, i32) {
    %c0_i32 = arith.constant 0 : i32
    %c0_i32_0 = arith.constant 0 : i32
    %c0_i32_1 = arith.constant 0 : i32
    return %c0_i32, %c0_i32_0 : i32, i32
  }
  func.func @transform_6(%arg0: i32) -> (i32, i32) {
    %c0_i32 = arith.constant 0 : i32
    %c0_i32_0 = arith.constant 0 : i32
    %c0_i32_1 = arith.constant 0 : i32
    return %c0_i32, %c0_i32_0 : i32, i32
  }
  func.func @transform_7(%arg0: i32) -> (i32, i32) {
    %c0_i32 = arith.constant 0 : i32
    %c0_i32_0 = arith.constant 0 : i32
    %c0_i32_1 = arith.constant 0 : i32
    return %c0_i32, %c0_i32_0 : i32, i32
  }
  func.func @transform_8(%arg0: i32) -> (i32, i32) {
    %c0_i32 = arith.constant 0 : i32
    %c0_i32_0 = arith.constant 0 : i32
    %c0_i32_1 = arith.constant 0 : i32
    return %c0_i32, %c0_i32_0 : i32, i32
  }
  func.func @transform_9(%arg0: i32) -> (i32, i32) {
    %c0_i32 = arith.constant 0 : i32
    %c0_i32_0 = arith.constant 0 : i32
    %c0_i32_1 = arith.constant 0 : i32
    return %c0_i32, %c0_i32_0 : i32, i32
  }
  func.func @transform_10(%arg0: i32) -> (i32, i32) {
    %c0_i32 = arith.constant 0 : i32
    %c0_i32_0 = arith.constant 0 : i32
    %c0_i32_1 = arith.constant 0 : i32
    return %c0_i32, %c0_i32_0 : i32, i32
  }
  func.func @transform_11(%arg0: i32) -> (i32, i32) {
    %c0_i32 = arith.constant 0 : i32
    %c0_i32_0 = arith.constant 0 : i32
    return %arg0, %c0_i32 : i32, i32
  }
}

</mosaic_0001>

<llo_original>
// kernel: push_nn_privileged_actor.1
$region0: #{push_nn_privileged_actor.1}
  #allocation0 [shape = 'u32[]', space=smem, size = 0x4, offset = 0x4, fixed_abs, tag = 'smem constant byte address 0x4 - core index']
  #allocation1 [shape = 'u32[144,128]{1,0:T(1,128)}', space=vmem, size = 0x12000, scoped, tag = 'internal scratch']
  %s0 = inlined_call_operand.vmem [shape: f32[8,9], index: 0, kind: input, shape index: {}]
  %s1 = inlined_call_operand.vmem [shape: bf16[9,256], index: 1, kind: input, shape index: {}]
  %s2 = inlined_call_operand.vmem [shape: f32[1,256], index: 2, kind: input, shape index: {}]
  %s3 = inlined_call_operand.vmem [shape: bf16[256,256], index: 3, kind: input, shape index: {}]
  %s4 = inlined_call_operand.vmem [shape: f32[1,256], index: 4, kind: input, shape index: {}]
  %s5 = inlined_call_operand.vmem [shape: bf16[256,256], index: 5, kind: input, shape index: {}]
  %s6 = inlined_call_operand.vmem [shape: f32[1,256], index: 6, kind: input, shape index: {}]
  %s7 = inlined_call_operand.vmem [shape: bf16[256,256], index: 7, kind: input, shape index: {}]
  %s8 = inlined_call_operand.vmem [shape: f32[1,256], index: 8, kind: input, shape index: {}]
  %s9 = inlined_call_operand.vmem [shape: bf16[256,4], index: 9, kind: input, shape index: {}]
  %s10 = inlined_call_operand.vmem [shape: f32[1,4], index: 10, kind: input, shape index: {}]
  %s11 = inlined_call_operand.vmem [shape: f32[8,4], index: 11, kind: output, shape index: {}]
  %s12 = sld [smem:[#allocation0]]
  $region54: #{push_nn_privileged_actor.1} parent=0
    _
  %s14 = ssub.s32 1, %s12
  %s15 = scalar_select 0, %s14, %s12
  // Predicated region
  $region2: #{push_nn_privileged_actor.1} parent=0 // pred_check
    _
  $region3: #{push_nn_privileged_actor.1} parent=0 // pred_check_branch
    %17 = sbr.rel (0) target = $region5
  $region4: #{push_nn_privileged_actor.1} parent=0 // pred_region
    _
  $region5: #{push_nn_privileged_actor.1} parent=0 // pred_fallthru
    _
  // Predicated region
  $region6: #{push_nn_privileged_actor.1} parent=0 // pred_check
    _
  $region7: #{push_nn_privileged_actor.1} parent=0 // pred_check_branch
    %19 = sbr.rel (0) target = $region9
  $region8: #{push_nn_privileged_actor.1} parent=0 // pred_region
    _
  $region9: #{push_nn_privileged_actor.1} parent=0 // pred_fallthru
    _
  // Predicated region
  $region10: #{push_nn_privileged_actor.1} parent=0 // pred_check
    _
  $region11: #{push_nn_privileged_actor.1} parent=0 // pred_check_branch
    %21 = sbr.rel (0) target = $region13
  $region12: #{push_nn_privileged_actor.1} parent=0 // pred_region
    _
  $region13: #{push_nn_privileged_actor.1} parent=0 // pred_fallthru
    _
  // Predicated region
  $region14: #{push_nn_privileged_actor.1} parent=0 // pred_check
    _
  $region15: #{push_nn_privileged_actor.1} parent=0 // pred_check_branch
    %23 = sbr.rel (0) target = $region17
  $region16: #{push_nn_privileged_actor.1} parent=0 // pred_region
    _
  $region17: #{push_nn_privileged_actor.1} parent=0 // pred_fallthru
    _
  // Predicated region
  $region18: #{push_nn_privileged_actor.1} parent=0 // pred_check
    _
  $region19: #{push_nn_privileged_actor.1} parent=0 // pred_check_branch
    %25 = sbr.rel (0) target = $region21
  $region20: #{push_nn_privileged_actor.1} parent=0 // pred_region
    _
  $region21: #{push_nn_privileged_actor.1} parent=0 // pred_fallthru
    _
  // Predicated region
  $region22: #{push_nn_privileged_actor.1} parent=0 // pred_check
    _
  $region23: #{push_nn_privileged_actor.1} parent=0 // pred_check_branch
    %27 = sbr.rel (0) target = $region25
  $region24: #{push_nn_privileged_actor.1} parent=0 // pred_region
    _
  $region25: #{push_nn_privileged_actor.1} parent=0 // pred_fallthru
    _
  // Predicated region
  $region26: #{push_nn_privileged_actor.1} parent=0 // pred_check
    _
  $region27: #{push_nn_privileged_actor.1} parent=0 // pred_check_branch
    %29 = sbr.rel (0) target = $region29
  $region28: #{push_nn_privileged_actor.1} parent=0 // pred_region
    _
  $region29: #{push_nn_privileged_actor.1} parent=0 // pred_fallthru
    _
  // Predicated region
  $region30: #{push_nn_privileged_actor.1} parent=0 // pred_check
    _
  $region31: #{push_nn_privileged_actor.1} parent=0 // pred_check_branch
    %31 = sbr.rel (0) target = $region33
  $region32: #{push_nn_privileged_actor.1} parent=0 // pred_region
    _
  $region33: #{push_nn_privileged_actor.1} parent=0 // pred_fallthru
    _
  // Predicated region
  $region34: #{push_nn_privileged_actor.1} parent=0 // pred_check
    _
  $region35: #{push_nn_privileged_actor.1} parent=0 // pred_check_branch
    %33 = sbr.rel (0) target = $region37
  $region36: #{push_nn_privileged_actor.1} parent=0 // pred_region
    _
  $region37: #{push_nn_privileged_actor.1} parent=0 // pred_fallthru
    _
  // Predicated region
  $region38: #{push_nn_privileged_actor.1} parent=0 // pred_check
    _
  $region39: #{push_nn_privileged_actor.1} parent=0 // pred_check_branch
    %35 = sbr.rel (0) target = $region41
  $region40: #{push_nn_privileged_actor.1} parent=0 // pred_region
    _
  $region41: #{push_nn_privileged_actor.1} parent=0 // pred_fallthru
    _
  // Predicated region
  $region42: #{push_nn_privileged_actor.1} parent=0 // pred_check
    _
  $region43: #{push_nn_privileged_actor.1} parent=0 // pred_check_branch
    %37 = sbr.rel (0) target = $region45
  $region44: #{push_nn_privileged_actor.1} parent=0 // pred_region
    _
  $region45: #{push_nn_privileged_actor.1} parent=0 // pred_fallthru
    _
  %v39 = vld [vmem:[%s0] sm:$0xff]
  %v40 = vpack.c.bf16 %v39, %v39
  %v41 = vld [vmem:[%s1] sm:$0xff]
  %v42 = vld [vmem:[%s1 + $0x8] sm:$0x11]
  %v43 = vld [vmem:[%s2] sm:$0x3]
  %v45 = vlaneseq
  %v46 = vshrl.u32 %v45, 7
  %v47 = vsub.s32 0, %v46
  %v48 = vrot.slane %v43, %v47
  %v49 = vlaneseq
  %v50 = vshrl.u32 %v49, 7
  %v51 = vsub.s32 1, %v50
  %v52 = vrot.slane %v43, %v51
  %v57 = vunpack.c.l.b16 %v41
  %v58 = vunpack.c.h.b16 %v41
  %v59 = vunpack.c.l.b16 %v42
  %v60 = vunpack.c.h.b16 %v42
  %v61 = vpack.c.b16 %v59, %v57
  %v62 = vpack.c.b16 %v60, %v58
  %vm63 = vcmask 72704
  %v65 = vsel %vm63, %v40, 0
  %vm67 = vcmask 1043456
  %vm68 = vcmask 1044480
  %v69 = vsel %vm67, 4294967295, 65535
  %v70 = vsel %vm68, %v69, 0
  %v72 = vand.u32 %v61, %v70
  %v75 = vand.u32 %v62, %v70
  %77 = vmatprep.subr.bf16.mxu0 0
  %78 = vmatpush1.bf16.msra.mxu0 0
  %79 = vmatprep.subr.bf16.mxu0 0
  %80 = vmatpush1.bf16.msra.mxu0 0
  %81 = vmatprep.subr.bf16.mxu0 0
  %82 = vmatpush1.bf16.msra.mxu0 0
  %83 = vmatprep.subr.bf16.mxu0 0
  %84 = vmatpush1.bf16.msra.mxu0 0
  %85 = vmatprep.subr.bf16.mxu0 0
  %86 = vmatpush1.bf16.msra.mxu0 0
  %87 = vmatprep.subr.bf16.mxu0 0
  %88 = vmatpush1.bf16.msra.mxu0 0
  %89 = vmatprep.subr.bf16.mxu0 0
  %90 = vmatpush1.bf16.msra.mxu0 0
  %91 = vmatprep.subr.bf16.mxu0 %v75
  %92 = vmatpush1.bf16.msra.mxu0 %v72
  %93 = vmatprep.subr.bf16.mxu0 0
  %94 = vmatpush2.bf16.msra.mxu0 0
  %95 = vmatprep.subr.bf16.mxu0 0
  %96 = vmatpush2.bf16.msra.mxu0 0
  %97 = vmatprep.subr.bf16.mxu0 0
  %98 = vmatpush2.bf16.msra.mxu0 0
  %99 = vmatprep.subr.bf16.mxu0 0
  %100 = vmatpush2.bf16.msra.mxu0 0
  %101 = vmatprep.subr.bf16.mxu0 0
  %102 = vmatpush2.bf16.msra.mxu0 0
  %103 = vmatprep.subr.bf16.mxu0 0
  %104 = vmatpush2.bf16.msra.mxu0 0
  %105 = vmatprep.subr.bf16.mxu0 0
  %106 = vmatpush2.bf16.msra.mxu0 0
  %107 = vmatprep.subr.bf16.mxu0 0
  %108 = vmatpush2.bf16.msra.mxu0 0
  %109 = vmatprep.mubr.bf16.mxu0 0
  %110 = vmatmul.mubr.bf16.gmra.mxu0 %v65
  %v111 = vpop.f32.mrf.mxu0
  %v112 = vadd.f32 %v48, %v111
  %v113 = vpop.f32.mrf.mxu0
  %v114 = vadd.f32 %v52, %v113
  %v115 = vpop.f32.mrf.mxu0
  %v116 = vpop.f32.mrf.mxu0
  %117 = vdwg.mxu0
  %v118 = vmin.f32 %v112, 20.0
  %v119 = vmin.f32 %v114, 20.0
  %v120 = vmul.f32 %v118, 1.442695
  %v121 = vpow.pop %v120
  %v122 = vmul.f32 %v119, 1.442695
  %v123 = vpow.pop %v122
  %v124 = vadd.f32 %v121, 2.0
  %v125 = vadd.f32 %v123, 2.0
  %v126 = vmul.f32 %v121, %v124
  %v127 = vmul.f32 %v123, %v125
  %v128 = vmul.f32 %v112, %v126
  %v129 = vmul.f32 %v114, %v127
  %v130 = vadd.f32 %v126, 2.0
  %v131 = vadd.f32 %v127, 2.0
  %v132 = vrcp.pop %v130
  %v133 = vrcp.pop %v131
  %v134 = vmul.f32 %v128, %v132
  %v135 = vmul.f32 %v129, %v133
  %vm136 = vcmp.gt.f32.partialorder %v112, 20.0
  %vm137 = vcmp.gt.f32.partialorder %v114, 20.0
  %v138 = vsel %vm136, %v112, %v134
  %v139 = vsel %vm137, %v114, %v135
  %v140 = vpack.c.bf16 %v138, %v138
  %v141 = vpack.c.bf16 %v139, %v139
  %v142 = vld [vmem:[%s3] sm:$0xff]
  %v143 = vld [vmem:[%s3 + $0x8] sm:$0xff]
  %v144 = vld [vmem:[%s3 + $0x10] sm:$0xff]
  %v145 = vld [vmem:[%s3 + $0x18] sm:$0xff]
  %v146 = vld [vmem:[%s3 + $0x20] sm:$0xff]
  %v147 = vld [vmem:[%s3 + $0x28] sm:$0xff]
  %v148 = vld [vmem:[%s3 + $0x30] sm:$0xff]
  %v149 = vld [vmem:[%s3 + $0x38] sm:$0xff]
  %v150 = vld [vmem:[%s3 + $0x40] sm:$0xff]
  %v151 = vld [vmem:[%s3 + $0x48] sm:$0xff]
  %v152 = vld [vmem:[%s3 + $0x50] sm:$0xff]
  %v153 = vld [vmem:[%s3 + $0x58] sm:$0xff]
  %v154 = vld [vmem:[%s3 + $0x60] sm:$0xff]
  %v155 = vld [vmem:[%s3 + $0x68] sm:$0xff]
  %v156 = vld [vmem:[%s3 + $0x70] sm:$0xff]
  %v157 = vld [vmem:[%s3 + $0x78] sm:$0xff]
  %v158 = vld [vmem:[%s3 + $0x80] sm:$0xff]
  %v159 = vld [vmem:[%s3 + $0x88] sm:$0xff]
  %v160 = vld [vmem:[%s3 + $0x90] sm:$0xff]
  %v161 = vld [vmem:[%s3 + $0x98] sm:$0xff]
  %v162 = vld [vmem:[%s3 + $0xa0] sm:$0xff]
  %v163 = vld [vmem:[%s3 + $0xa8] sm:$0xff]
  %v164 = vld [vmem:[%s3 + $0xb0] sm:$0xff]
  %v165 = vld [vmem:[%s3 + $0xb8] sm:$0xff]
  %v166 = vld [vmem:[%s3 + $0xc0] sm:$0xff]
  %v167 = vld [vmem:[%s3 + $0xc8] sm:$0xff]
  %v168 = vld [vmem:[%s3 + $0xd0] sm:$0xff]
  %v169 = vld [vmem:[%s3 + $0xd8] sm:$0xff]
  %v170 = vld [vmem:[%s3 + $0xe0] sm:$0xff]
  %v171 = vld [vmem:[%s3 + $0xe8] sm:$0xff]
  %v172 = vld [vmem:[%s3 + $0xf0] sm:$0xff]
  %v173 = vld [vmem:[%s3 + $0xf8] sm:$0xff]
  %v174 = vld [vmem:[%s4] sm:$0x3]
  %v176 = vlaneseq
  %v177 = vshrl.u32 %v176, 7
  %v178 = vsub.s32 0, %v177
  %v179 = vrot.slane %v174, %v178
  %v180 = vlaneseq
  %v181 = vshrl.u32 %v180, 7
  %v182 = vsub.s32 1, %v181
  %v183 = vrot.slane %v174, %v182
  %v218 = vunpack.c.l.b16 %v142
  %v219 = vunpack.c.h.b16 %v142
  %v220 = vunpack.c.l.b16 %v143
  %v221 = vunpack.c.h.b16 %v143
  %v222 = vunpack.c.l.b16 %v144
  %v223 = vunpack.c.h.b16 %v144
  %v224 = vunpack.c.l.b16 %v145
  %v225 = vunpack.c.h.b16 %v145
  %v226 = vunpack.c.l.b16 %v146
  %v227 = vunpack.c.h.b16 %v146
  %v228 = vunpack.c.l.b16 %v147
  %v229 = vunpack.c.h.b16 %v147
  %v230 = vunpack.c.l.b16 %v148
  %v231 = vunpack.c.h.b16 %v148
  %v232 = vunpack.c.l.b16 %v149
  %v233 = vunpack.c.h.b16 %v149
  %v234 = vunpack.c.l.b16 %v150
  %v235 = vunpack.c.h.b16 %v150
  %v236 = vunpack.c.l.b16 %v151
  %v237 = vunpack.c.h.b16 %v151
  %v238 = vunpack.c.l.b16 %v152
  %v239 = vunpack.c.h.b16 %v152
  %v240 = vunpack.c.l.b16 %v153
  %v241 = vunpack.c.h.b16 %v153
  %v242 = vunpack.c.l.b16 %v154
  %v243 = vunpack.c.h.b16 %v154
  %v244 = vunpack.c.l.b16 %v155
  %v245 = vunpack.c.h.b16 %v155
  %v246 = vunpack.c.l.b16 %v156
  %v247 = vunpack.c.h.b16 %v156
  %v248 = vunpack.c.l.b16 %v157
  %v249 = vunpack.c.h.b16 %v157
  %v250 = vunpack.c.l.b16 %v158
  %v251 = vunpack.c.h.b16 %v158
  %v252 = vunpack.c.l.b16 %v159
  %v253 = vunpack.c.h.b16 %v159
  %v254 = vunpack.c.l.b16 %v160
  %v255 = vunpack.c.h.b16 %v160
  %v256 = vunpack.c.l.b16 %v161
  %v257 = vunpack.c.h.b16 %v161
  %v258 = vunpack.c.l.b16 %v162
  %v259 = vunpack.c.h.b16 %v162
  %v260 = vunpack.c.l.b16 %v163
  %v261 = vunpack.c.h.b16 %v163
  %v262 = vunpack.c.l.b16 %v164
  %v263 = vunpack.c.h.b16 %v164
  %v264 = vunpack.c.l.b16 %v165
  %v265 = vunpack.c.h.b16 %v165
  %v266 = vunpack.c.l.b16 %v166
  %v267 = vunpack.c.h.b16 %v166
  %v268 = vunpack.c.l.b16 %v167
  %v269 = vunpack.c.h.b16 %v167
  %v270 = vunpack.c.l.b16 %v168
  %v271 = vunpack.c.h.b16 %v168
  %v272 = vunpack.c.l.b16 %v169
  %v273 = vunpack.c.h.b16 %v169
  %v274 = vunpack.c.l.b16 %v170
  %v275 = vunpack.c.h.b16 %v170
  %v276 = vunpack.c.l.b16 %v171
  %v277 = vunpack.c.h.b16 %v171
  %v278 = vunpack.c.l.b16 %v172
  %v279 = vunpack.c.h.b16 %v172
  %v280 = vunpack.c.l.b16 %v173
  %v281 = vunpack.c.h.b16 %v173
  %v282 = vpack.c.b16 %v220, %v218
  %v283 = vpack.c.b16 %v221, %v219
  %v284 = vpack.c.b16 %v224, %v222
  %v285 = vpack.c.b16 %v225, %v223
  %v286 = vpack.c.b16 %v228, %v226
  %v287 = vpack.c.b16 %v229, %v227
  %v288 = vpack.c.b16 %v232, %v230
  %v289 = vpack.c.b16 %v233, %v231
  %v290 = vpack.c.b16 %v236, %v234
  %v291 = vpack.c.b16 %v237, %v235
  %v292 = vpack.c.b16 %v240, %v238
  %v293 = vpack.c.b16 %v241, %v239
  %v294 = vpack.c.b16 %v244, %v242
  %v295 = vpack.c.b16 %v245, %v243
  %v296 = vpack.c.b16 %v248, %v246
  %v297 = vpack.c.b16 %v249, %v247
  %v298 = vpack.c.b16 %v252, %v250
  %v299 = vpack.c.b16 %v253, %v251
  %v300 = vpack.c.b16 %v256, %v254
  %v301 = vpack.c.b16 %v257, %v255
  %v302 = vpack.c.b16 %v260, %v258
  %v303 = vpack.c.b16 %v261, %v259
  %v304 = vpack.c.b16 %v264, %v262
  %v305 = vpack.c.b16 %v265, %v263
  %v306 = vpack.c.b16 %v268, %v266
  %v307 = vpack.c.b16 %v269, %v267
  %v308 = vpack.c.b16 %v272, %v270
  %v309 = vpack.c.b16 %v273, %v271
  %v310 = vpack.c.b16 %v276, %v274
  %v311 = vpack.c.b16 %v277, %v275
  %v312 = vpack.c.b16 %v280, %v278
  %v313 = vpack.c.b16 %v281, %v279
  %346 = vmatprep.subr.bf16.mxu0 %v297
  %347 = vmatpush1.bf16.msra.mxu0 %v296
  %348 = vmatprep.subr.bf16.mxu0 %v295
  %349 = vmatpush1.bf16.msra.mxu0 %v294
  %350 = vmatprep.subr.bf16.mxu0 %v293
  %351 = vmatpush1.bf16.msra.mxu0 %v292
  %352 = vmatprep.subr.bf16.mxu0 %v291
  %353 = vmatpush1.bf16.msra.mxu0 %v290
  %354 = vmatprep.subr.bf16.mxu0 %v289
  %355 = vmatpush1.bf16.msra.mxu0 %v288
  %356 = vmatprep.subr.bf16.mxu0 %v287
  %357 = vmatpush1.bf16.msra.mxu0 %v286
  %358 = vmatprep.subr.bf16.mxu0 %v285
  %359 = vmatpush1.bf16.msra.mxu0 %v284
  %360 = vmatprep.subr.bf16.mxu0 %v283
  %361 = vmatpush1.bf16.msra.mxu0 %v282
  %362 = vmatprep.subr.bf16.mxu0 %v313
  %363 = vmatpush2.bf16.msra.mxu0 %v312
  %364 = vmatprep.subr.bf16.mxu0 %v311
  %365 = vmatpush2.bf16.msra.mxu0 %v310
  %366 = vmatprep.subr.bf16.mxu0 %v309
  %367 = vmatpush2.bf16.msra.mxu0 %v308
  %368 = vmatprep.subr.bf16.mxu0 %v307
  %369 = vmatpush2.bf16.msra.mxu0 %v306
  %370 = vmatprep.subr.bf16.mxu0 %v305
  %371 = vmatpush2.bf16.msra.mxu0 %v304
  %372 = vmatprep.subr.bf16.mxu0 %v303
  %373 = vmatpush2.bf16.msra.mxu0 %v302
  %374 = vmatprep.subr.bf16.mxu0 %v301
  %375 = vmatpush2.bf16.msra.mxu0 %v300
  %376 = vmatprep.subr.bf16.mxu0 %v299
  %377 = vmatpush2.bf16.msra.mxu0 %v298
  %378 = vmatprep.mubr.bf16.mxu0 %v141
  %379 = vmatmul.mubr.bf16.gmra.mxu0 %v140
  %v380 = vpop.f32.mrf.mxu0
  %v381 = vadd.f32 %v179, %v380
  %v382 = vpop.f32.mrf.mxu0
  %v383 = vadd.f32 %v183, %v382
  %v384 = vpop.f32.mrf.mxu0
  %v385 = vpop.f32.mrf.mxu0
  %386 = vdwg.mxu0
  %v387 = vmin.f32 %v381, 20.0
  %v388 = vmin.f32 %v383, 20.0
  %v389 = vmul.f32 %v387, 1.442695
  %v390 = vpow.pop %v389
  %v391 = vmul.f32 %v388, 1.442695
  %v392 = vpow.pop %v391
  %v393 = vadd.f32 %v390, 2.0
  %v394 = vadd.f32 %v392, 2.0
  %v395 = vmul.f32 %v390, %v393
  %v396 = vmul.f32 %v392, %v394
  %v397 = vmul.f32 %v381, %v395
  %v398 = vmul.f32 %v383, %v396
  %v399 = vadd.f32 %v395, 2.0
  %v400 = vadd.f32 %v396, 2.0
  %v401 = vrcp.pop %v399
  %v402 = vrcp.pop %v400
  %v403 = vmul.f32 %v397, %v401
  %v404 = vmul.f32 %v398, %v402
  %vm405 = vcmp.gt.f32.partialorder %v381, 20.0
  %vm406 = vcmp.gt.f32.partialorder %v383, 20.0
  %v407 = vsel %vm405, %v381, %v403
  %v408 = vsel %vm406, %v383, %v404
  %v409 = vpack.c.bf16 %v407, %v407
  %v410 = vpack.c.bf16 %v408, %v408
  %v411 = vld [vmem:[%s5] sm:$0xff]
  %v412 = vld [vmem:[%s5 + $0x8] sm:$0xff]
  %v413 = vld [vmem:[%s5 + $0x10] sm:$0xff]
  %v414 = vld [vmem:[%s5 + $0x18] sm:$0xff]
  %v415 = vld [vmem:[%s5 + $0x20] sm:$0xff]
  %v416 = vld [vmem:[%s5 + $0x28] sm:$0xff]
  %v417 = vld [vmem:[%s5 + $0x30] sm:$0xff]
  %v418 = vld [vmem:[%s5 + $0x38] sm:$0xff]
  %v419 = vld [vmem:[%s5 + $0x40] sm:$0xff]
  %v420 = vld [vmem:[%s5 + $0x48] sm:$0xff]
  %v421 = vld [vmem:[%s5 + $0x50] sm:$0xff]
  %v422 = vld [vmem:[%s5 + $0x58] sm:$0xff]
  %v423 = vld [vmem:[%s5 + $0x60] sm:$0xff]
  %v424 = vld [vmem:[%s5 + $0x68] sm:$0xff]
  %v425 = vld [vmem:[%s5 + $0x70] sm:$0xff]
  %v426 = vld [vmem:[%s5 + $0x78] sm:$0xff]
  %v427 = vld [vmem:[%s5 + $0x80] sm:$0xff]
  %v428 = vld [vmem:[%s5 + $0x88] sm:$0xff]
  %v429 = vld [vmem:[%s5 + $0x90] sm:$0xff]
  %v430 = vld [vmem:[%s5 + $0x98] sm:$0xff]
  %v431 = vld [vmem:[%s5 + $0xa0] sm:$0xff]
  %v432 = vld [vmem:[%s5 + $0xa8] sm:$0xff]
  %v433 = vld [vmem:[%s5 + $0xb0] sm:$0xff]
  %v434 = vld [vmem:[%s5 + $0xb8] sm:$0xff]
  %v435 = vld [vmem:[%s5 + $0xc0] sm:$0xff]
  %v436 = vld [vmem:[%s5 + $0xc8] sm:$0xff]
  %v437 = vld [vmem:[%s5 + $0xd0] sm:$0xff]
  %v438 = vld [vmem:[%s5 + $0xd8] sm:$0xff]
  %v439 = vld [vmem:[%s5 + $0xe0] sm:$0xff]
  %v440 = vld [vmem:[%s5 + $0xe8] sm:$0xff]
  %v441 = vld [vmem:[%s5 + $0xf0] sm:$0xff]
  %v442 = vld [vmem:[%s5 + $0xf8] sm:$0xff]
  %v443 = vld [vmem:[%s6] sm:$0x3]
  %v445 = vlaneseq
  %v446 = vshrl.u32 %v445, 7
  %v447 = vsub.s32 0, %v446
  %v448 = vrot.slane %v443, %v447
  %v449 = vlaneseq
  %v450 = vshrl.u32 %v449, 7
  %v451 = vsub.s32 1, %v450
  %v452 = vrot.slane %v443, %v451
  %v487 = vunpack.c.l.b16 %v411
  %v488 = vunpack.c.h.b16 %v411
  %v489 = vunpack.c.l.b16 %v412
  %v490 = vunpack.c.h.b16 %v412
  %v491 = vunpack.c.l.b16 %v413
  %v492 = vunpack.c.h.b16 %v413
  %v493 = vunpack.c.l.b16 %v414
  %v494 = vunpack.c.h.b16 %v414
  %v495 = vunpack.c.l.b16 %v415
  %v496 = vunpack.c.h.b16 %v415
  %v497 = vunpack.c.l.b16 %v416
  %v498 = vunpack.c.h.b16 %v416
  %v499 = vunpack.c.l.b16 %v417
  %v500 = vunpack.c.h.b16 %v417
  %v501 = vunpack.c.l.b16 %v418
  %v502 = vunpack.c.h.b16 %v418
  %v503 = vunpack.c.l.b16 %v419
  %v504 = vunpack.c.h.b16 %v419
  %v505 = vunpack.c.l.b16 %v420
  %v506 = vunpack.c.h.b16 %v420
  %v507 = vunpack.c.l.b16 %v421
  %v508 = vunpack.c.h.b16 %v421
  %v509 = vunpack.c.l.b16 %v422
  %v510 = vunpack.c.h.b16 %v422
  %v511 = vunpack.c.l.b16 %v423
  %v512 = vunpack.c.h.b16 %v423
  %v513 = vunpack.c.l.b16 %v424
  %v514 = vunpack.c.h.b16 %v424
  %v515 = vunpack.c.l.b16 %v425
  %v516 = vunpack.c.h.b16 %v425
  %v517 = vunpack.c.l.b16 %v426
  %v518 = vunpack.c.h.b16 %v426
  %v519 = vunpack.c.l.b16 %v427
  %v520 = vunpack.c.h.b16 %v427
  %v521 = vunpack.c.l.b16 %v428
  %v522 = vunpack.c.h.b16 %v428
  %v523 = vunpack.c.l.b16 %v429
  %v524 = vunpack.c.h.b16 %v429
  %v525 = vunpack.c.l.b16 %v430
  %v526 = vunpack.c.h.b16 %v430
  %v527 = vunpack.c.l.b16 %v431
  %v528 = vunpack.c.h.b16 %v431
  %v529 = vunpack.c.l.b16 %v432
  %v530 = vunpack.c.h.b16 %v432
  %v531 = vunpack.c.l.b16 %v433
  %v532 = vunpack.c.h.b16 %v433
  %v533 = vunpack.c.l.b16 %v434
  %v534 = vunpack.c.h.b16 %v434
  %v535 = vunpack.c.l.b16 %v435
  %v536 = vunpack.c.h.b16 %v435
  %v537 = vunpack.c.l.b16 %v436
  %v538 = vunpack.c.h.b16 %v436
  %v539 = vunpack.c.l.b16 %v437
  %v540 = vunpack.c.h.b16 %v437
  %v541 = vunpack.c.l.b16 %v438
  %v542 = vunpack.c.h.b16 %v438
  %v543 = vunpack.c.l.b16 %v439
  %v544 = vunpack.c.h.b16 %v439
  %v545 = vunpack.c.l.b16 %v440
  %v546 = vunpack.c.h.b16 %v440
  %v547 = vunpack.c.l.b16 %v441
  %v548 = vunpack.c.h.b16 %v441
  %v549 = vunpack.c.l.b16 %v442
  %v550 = vunpack.c.h.b16 %v442
  %v551 = vpack.c.b16 %v489, %v487
  %v552 = vpack.c.b16 %v490, %v488
  %v553 = vpack.c.b16 %v493, %v491
  %v554 = vpack.c.b16 %v494, %v492
  %v555 = vpack.c.b16 %v497, %v495
  %v556 = vpack.c.b16 %v498, %v496
  %v557 = vpack.c.b16 %v501, %v499
  %v558 = vpack.c.b16 %v502, %v500
  %v559 = vpack.c.b16 %v505, %v503
  %v560 = vpack.c.b16 %v506, %v504
  %v561 = vpack.c.b16 %v509, %v507
  %v562 = vpack.c.b16 %v510, %v508
  %v563 = vpack.c.b16 %v513, %v511
  %v564 = vpack.c.b16 %v514, %v512
  %v565 = vpack.c.b16 %v517, %v515
  %v566 = vpack.c.b16 %v518, %v516
  %v567 = vpack.c.b16 %v521, %v519
  %v568 = vpack.c.b16 %v522, %v520
  %v569 = vpack.c.b16 %v525, %v523
  %v570 = vpack.c.b16 %v526, %v524
  %v571 = vpack.c.b16 %v529, %v527
  %v572 = vpack.c.b16 %v530, %v528
  %v573 = vpack.c.b16 %v533, %v531
  %v574 = vpack.c.b16 %v534, %v532
  %v575 = vpack.c.b16 %v537, %v535
  %v576 = vpack.c.b16 %v538, %v536
  %v577 = vpack.c.b16 %v541, %v539
  %v578 = vpack.c.b16 %v542, %v540
  %v579 = vpack.c.b16 %v545, %v543
  %v580 = vpack.c.b16 %v546, %v544
  %v581 = vpack.c.b16 %v549, %v547
  %v582 = vpack.c.b16 %v550, %v548
  %615 = vmatprep.subr.bf16.mxu0 %v566
  %616 = vmatpush1.bf16.msra.mxu0 %v565
  %617 = vmatprep.subr.bf16.mxu0 %v564
  %618 = vmatpush1.bf16.msra.mxu0 %v563
  %619 = vmatprep.subr.bf16.mxu0 %v562
  %620 = vmatpush1.bf16.msra.mxu0 %v561
  %621 = vmatprep.subr.bf16.mxu0 %v560
  %622 = vmatpush1.bf16.msra.mxu0 %v559
  %623 = vmatprep.subr.bf16.mxu0 %v558
  %624 = vmatpush1.bf16.msra.mxu0 %v557
  %625 = vmatprep.subr.bf16.mxu0 %v556
  %626 = vmatpush1.bf16.msra.mxu0 %v555
  %627 = vmatprep.subr.bf16.mxu0 %v554
  %628 = vmatpush1.bf16.msra.mxu0 %v553
  %629 = vmatprep.subr.bf16.mxu0 %v552
  %630 = vmatpush1.bf16.msra.mxu0 %v551
  %631 = vmatprep.subr.bf16.mxu0 %v582
  %632 = vmatpush2.bf16.msra.mxu0 %v581
  %633 = vmatprep.subr.bf16.mxu0 %v580
  %634 = vmatpush2.bf16.msra.mxu0 %v579
  %635 = vmatprep.subr.bf16.mxu0 %v578
  %636 = vmatpush2.bf16.msra.mxu0 %v577
  %637 = vmatprep.subr.bf16.mxu0 %v576
  %638 = vmatpush2.bf16.msra.mxu0 %v575
  %639 = vmatprep.subr.bf16.mxu0 %v574
  %640 = vmatpush2.bf16.msra.mxu0 %v573
  %641 = vmatprep.subr.bf16.mxu0 %v572
  %642 = vmatpush2.bf16.msra.mxu0 %v571
  %643 = vmatprep.subr.bf16.mxu0 %v570
  %644 = vmatpush2.bf16.msra.mxu0 %v569
  %645 = vmatprep.subr.bf16.mxu0 %v568
  %646 = vmatpush2.bf16.msra.mxu0 %v567
  %647 = vmatprep.mubr.bf16.mxu0 %v410
  %648 = vmatmul.mubr.bf16.gmra.mxu0 %v409
  %v649 = vpop.f32.mrf.mxu0
  %v650 = vadd.f32 %v448, %v649
  %v651 = vpop.f32.mrf.mxu0
  %v652 = vadd.f32 %v452, %v651
  %v653 = vpop.f32.mrf.mxu0
  %v654 = vpop.f32.mrf.mxu0
  %655 = vdwg.mxu0
  %v656 = vadd.f32 %v650, %v112
  %v657 = vadd.f32 %v652, %v114
  %v658 = vpack.c.bf16 %v656, %v656
  %v659 = vpack.c.bf16 %v657, %v657
  %v660 = vld [vmem:[%s7] sm:$0xff]
  %v661 = vld [vmem:[%s7 + $0x8] sm:$0xff]
  %v662 = vld [vmem:[%s7 + $0x10] sm:$0xff]
  %v663 = vld [vmem:[%s7 + $0x18] sm:$0xff]
  %v664 = vld [vmem:[%s7 + $0x20] sm:$0xff]
  %v665 = vld [vmem:[%s7 + $0x28] sm:$0xff]
  %v666 = vld [vmem:[%s7 + $0x30] sm:$0xff]
  %v667 = vld [vmem:[%s7 + $0x38] sm:$0xff]
  %v668 = vld [vmem:[%s7 + $0x40] sm:$0xff]
  %v669 = vld [vmem:[%s7 + $0x48] sm:$0xff]
  %v670 = vld [vmem:[%s7 + $0x50] sm:$0xff]
  %v671 = vld [vmem:[%s7 + $0x58] sm:$0xff]
  %v672 = vld [vmem:[%s7 + $0x60] sm:$0xff]
  %v673 = vld [vmem:[%s7 + $0x68] sm:$0xff]
  %v674 = vld [vmem:[%s7 + $0x70] sm:$0xff]
  %v675 = vld [vmem:[%s7 + $0x78] sm:$0xff]
  %v676 = vld [vmem:[%s7 + $0x80] sm:$0xff]
  %v677 = vld [vmem:[%s7 + $0x88] sm:$0xff]
  %v678 = vld [vmem:[%s7 + $0x90] sm:$0xff]
  %v679 = vld [vmem:[%s7 + $0x98] sm:$0xff]
  %v680 = vld [vmem:[%s7 + $0xa0] sm:$0xff]
  %v681 = vld [vmem:[%s7 + $0xa8] sm:$0xff]
  %v682 = vld [vmem:[%s7 + $0xb0] sm:$0xff]
  %v683 = vld [vmem:[%s7 + $0xb8] sm:$0xff]
  %v684 = vld [vmem:[%s7 + $0xc0] sm:$0xff]
  %v685 = vld [vmem:[%s7 + $0xc8] sm:$0xff]
  %v686 = vld [vmem:[%s7 + $0xd0] sm:$0xff]
  %v687 = vld [vmem:[%s7 + $0xd8] sm:$0xff]
  %v688 = vld [vmem:[%s7 + $0xe0] sm:$0xff]
  %v689 = vld [vmem:[%s7 + $0xe8] sm:$0xff]
  %v690 = vld [vmem:[%s7 + $0xf0] sm:$0xff]
  %v691 = vld [vmem:[%s7 + $0xf8] sm:$0xff]
  %v692 = vld [vmem:[%s8] sm:$0x3]
  %v694 = vlaneseq
  %v695 = vshrl.u32 %v694, 7
  %v696 = vsub.s32 0, %v695
  %v697 = vrot.slane %v692, %v696
  %v698 = vlaneseq
  %v699 = vshrl.u32 %v698, 7
  %v700 = vsub.s32 1, %v699
  %v701 = vrot.slane %v692, %v700
  %v736 = vunpack.c.l.b16 %v660
  %v737 = vunpack.c.h.b16 %v660
  %v738 = vunpack.c.l.b16 %v661
  %v739 = vunpack.c.h.b16 %v661
  %v740 = vunpack.c.l.b16 %v662
  %v741 = vunpack.c.h.b16 %v662
  %v742 = vunpack.c.l.b16 %v663
  %v743 = vunpack.c.h.b16 %v663
  %v744 = vunpack.c.l.b16 %v664
  %v745 = vunpack.c.h.b16 %v664
  %v746 = vunpack.c.l.b16 %v665
  %v747 = vunpack.c.h.b16 %v665
  %v748 = vunpack.c.l.b16 %v666
  %v749 = vunpack.c.h.b16 %v666
  %v750 = vunpack.c.l.b16 %v667
  %v751 = vunpack.c.h.b16 %v667
  %v752 = vunpack.c.l.b16 %v668
  %v753 = vunpack.c.h.b16 %v668
  %v754 = vunpack.c.l.b16 %v669
  %v755 = vunpack.c.h.b16 %v669
  %v756 = vunpack.c.l.b16 %v670
  %v757 = vunpack.c.h.b16 %v670
  %v758 = vunpack.c.l.b16 %v671
  %v759 = vunpack.c.h.b16 %v671
  %v760 = vunpack.c.l.b16 %v672
  %v761 = vunpack.c.h.b16 %v672
  %v762 = vunpack.c.l.b16 %v673
  %v763 = vunpack.c.h.b16 %v673
  %v764 = vunpack.c.l.b16 %v674
  %v765 = vunpack.c.h.b16 %v674
  %v766 = vunpack.c.l.b16 %v675
  %v767 = vunpack.c.h.b16 %v675
  %v768 = vunpack.c.l.b16 %v676
  %v769 = vunpack.c.h.b16 %v676
  %v770 = vunpack.c.l.b16 %v677
  %v771 = vunpack.c.h.b16 %v677
  %v772 = vunpack.c.l.b16 %v678
  %v773 = vunpack.c.h.b16 %v678
  %v774 = vunpack.c.l.b16 %v679
  %v775 = vunpack.c.h.b16 %v679
  %v776 = vunpack.c.l.b16 %v680
  %v777 = vunpack.c.h.b16 %v680
  %v778 = vunpack.c.l.b16 %v681
  %v779 = vunpack.c.h.b16 %v681
  %v780 = vunpack.c.l.b16 %v682
  %v781 = vunpack.c.h.b16 %v682
  %v782 = vunpack.c.l.b16 %v683
  %v783 = vunpack.c.h.b16 %v683
  %v784 = vunpack.c.l.b16 %v684
  %v785 = vunpack.c.h.b16 %v684
  %v786 = vunpack.c.l.b16 %v685
  %v787 = vunpack.c.h.b16 %v685
  %v788 = vunpack.c.l.b16 %v686
  %v789 = vunpack.c.h.b16 %v686
  %v790 = vunpack.c.l.b16 %v687
  %v791 = vunpack.c.h.b16 %v687
  %v792 = vunpack.c.l.b16 %v688
  %v793 = vunpack.c.h.b16 %v688
  %v794 = vunpack.c.l.b16 %v689
  %v795 = vunpack.c.h.b16 %v689
  %v796 = vunpack.c.l.b16 %v690
  %v797 = vunpack.c.h.b16 %v690
  %v798 = vunpack.c.l.b16 %v691
  %v799 = vunpack.c.h.b16 %v691
  %v800 = vpack.c.b16 %v738, %v736
  %v801 = vpack.c.b16 %v739, %v737
  %v802 = vpack.c.b16 %v742, %v740
  %v803 = vpack.c.b16 %v743, %v741
  %v804 = vpack.c.b16 %v746, %v744
  %v805 = vpack.c.b16 %v747, %v745
  %v806 = vpack.c.b16 %v750, %v748
  %v807 = vpack.c.b16 %v751, %v749
  %v808 = vpack.c.b16 %v754, %v752
  %v809 = vpack.c.b16 %v755, %v753
  %v810 = vpack.c.b16 %v758, %v756
  %v811 = vpack.c.b16 %v759, %v757
  %v812 = vpack.c.b16 %v762, %v760
  %v813 = vpack.c.b16 %v763, %v761
  %v814 = vpack.c.b16 %v766, %v764
  %v815 = vpack.c.b16 %v767, %v765
  %v816 = vpack.c.b16 %v770, %v768
  %v817 = vpack.c.b16 %v771, %v769
  %v818 = vpack.c.b16 %v774, %v772
  %v819 = vpack.c.b16 %v775, %v773
  %v820 = vpack.c.b16 %v778, %v776
  %v821 = vpack.c.b16 %v779, %v777
  %v822 = vpack.c.b16 %v782, %v780
  %v823 = vpack.c.b16 %v783, %v781
  %v824 = vpack.c.b16 %v786, %v784
  %v825 = vpack.c.b16 %v787, %v785
  %v826 = vpack.c.b16 %v790, %v788
  %v827 = vpack.c.b16 %v791, %v789
  %v828 = vpack.c.b16 %v794, %v792
  %v829 = vpack.c.b16 %v795, %v793
  %v830 = vpack.c.b16 %v798, %v796
  %v831 = vpack.c.b16 %v799, %v797
  %864 = vmatprep.subr.bf16.mxu0 %v815
  %865 = vmatpush1.bf16.msra.mxu0 %v814
  %866 = vmatprep.subr.bf16.mxu0 %v813
  %867 = vmatpush1.bf16.msra.mxu0 %v812
  %868 = vmatprep.subr.bf16.mxu0 %v811
  %869 = vmatpush1.bf16.msra.mxu0 %v810
  %870 = vmatprep.subr.bf16.mxu0 %v809
  %871 = vmatpush1.bf16.msra.mxu0 %v808
  %872 = vmatprep.subr.bf16.mxu0 %v807
  %873 = vmatpush1.bf16.msra.mxu0 %v806
  %874 = vmatprep.subr.bf16.mxu0 %v805
  %875 = vmatpush1.bf16.msra.mxu0 %v804
  %876 = vmatprep.subr.bf16.mxu0 %v803
  %877 = vmatpush1.bf16.msra.mxu0 %v802
  %878 = vmatprep.subr.bf16.mxu0 %v801
  %879 = vmatpush1.bf16.msra.mxu0 %v800
  %880 = vmatprep.subr.bf16.mxu0 %v831
  %881 = vmatpush2.bf16.msra.mxu0 %v830
  %882 = vmatprep.subr.bf16.mxu0 %v829
  %883 = vmatpush2.bf16.msra.mxu0 %v828
  %884 = vmatprep.subr.bf16.mxu0 %v827
  %885 = vmatpush2.bf16.msra.mxu0 %v826
  %886 = vmatprep.subr.bf16.mxu0 %v825
  %887 = vmatpush2.bf16.msra.mxu0 %v824
  %888 = vmatprep.subr.bf16.mxu0 %v823
  %889 = vmatpush2.bf16.msra.mxu0 %v822
  %890 = vmatprep.subr.bf16.mxu0 %v821
  %891 = vmatpush2.bf16.msra.mxu0 %v820
  %892 = vmatprep.subr.bf16.mxu0 %v819
  %893 = vmatpush2.bf16.msra.mxu0 %v818
  %894 = vmatprep.subr.bf16.mxu0 %v817
  %895 = vmatpush2.bf16.msra.mxu0 %v816
  %896 = vmatprep.mubr.bf16.mxu0 %v659
  %897 = vmatmul.mubr.bf16.gmra.mxu0 %v658
  %v898 = vpop.f32.mrf.mxu0
  %v899 = vadd.f32 %v697, %v898
  %v900 = vpop.f32.mrf.mxu0
  %v901 = vadd.f32 %v701, %v900
  %v902 = vpop.f32.mrf.mxu0
  %v903 = vpop.f32.mrf.mxu0
  %904 = vdwg.mxu0
  %v905 = vmin.f32 %v899, 20.0
  %v906 = vmin.f32 %v901, 20.0
  %v907 = vmul.f32 %v905, 1.442695
  %v908 = vpow.pop %v907
  %v909 = vmul.f32 %v906, 1.442695
  %v910 = vpow.pop %v909
  %v911 = vadd.f32 %v908, 2.0
  %v912 = vadd.f32 %v910, 2.0
  %v913 = vmul.f32 %v908, %v911
  %v914 = vmul.f32 %v910, %v912
  %v915 = vmul.f32 %v899, %v913
  %v916 = vmul.f32 %v901, %v914
  %v917 = vadd.f32 %v913, 2.0
  %v918 = vadd.f32 %v914, 2.0
  %v919 = vrcp.pop %v917
  %v920 = vrcp.pop %v918
  %v921 = vmul.f32 %v915, %v919
  %v922 = vmul.f32 %v916, %v920
  %vm923 = vcmp.gt.f32.partialorder %v899, 20.0
  %vm924 = vcmp.gt.f32.partialorder %v901, 20.0
  %v925 = vsel %vm923, %v899, %v921
  %v926 = vsel %vm924, %v901, %v922
  %v927 = vpack.c.bf16 %v925, %v925
  %v928 = vpack.c.bf16 %v926, %v926
  %v929 = vld [vmem:[%s9] sm:$0xf]
  %v930 = vld [vmem:[%s9 + $0x4] sm:$0xf]
  %v931 = vld [vmem:[%s9 + $0x8] sm:$0xf]
  %v932 = vld [vmem:[%s9 + $0xc] sm:$0xf]
  %v933 = vld [vmem:[%s9 + $0x10] sm:$0xf]
  %v934 = vld [vmem:[%s9 + $0x14] sm:$0xf]
  %v935 = vld [vmem:[%s9 + $0x18] sm:$0xf]
  %v936 = vld [vmem:[%s9 + $0x1c] sm:$0xf]
  %v937 = vld [vmem:[%s9 + $0x20] sm:$0xf]
  %v938 = vld [vmem:[%s9 + $0x24] sm:$0xf]
  %v939 = vld [vmem:[%s9 + $0x28] sm:$0xf]
  %v940 = vld [vmem:[%s9 + $0x2c] sm:$0xf]
  %v941 = vld [vmem:[%s9 + $0x30] sm:$0xf]
  %v942 = vld [vmem:[%s9 + $0x34] sm:$0xf]
  %v943 = vld [vmem:[%s9 + $0x38] sm:$0xf]
  %v944 = vld [vmem:[%s9 + $0x3c] sm:$0xf]
  %v945 = vld [vmem:[%s9 + $0x40] sm:$0xf]
  %v946 = vld [vmem:[%s9 + $0x44] sm:$0xf]
  %v947 = vld [vmem:[%s9 + $0x48] sm:$0xf]
  %v948 = vld [vmem:[%s9 + $0x4c] sm:$0xf]
  %v949 = vld [vmem:[%s9 + $0x50] sm:$0xf]
  %v950 = vld [vmem:[%s9 + $0x54] sm:$0xf]
  %v951 = vld [vmem:[%s9 + $0x58] sm:$0xf]
  %v952 = vld [vmem:[%s9 + $0x5c] sm:$0xf]
  %v953 = vld [vmem:[%s9 + $0x60] sm:$0xf]
  %v954 = vld [vmem:[%s9 + $0x64] sm:$0xf]
  %v955 = vld [vmem:[%s9 + $0x68] sm:$0xf]
  %v956 = vld [vmem:[%s9 + $0x6c] sm:$0xf]
  %v957 = vld [vmem:[%s9 + $0x70] sm:$0xf]
  %v958 = vld [vmem:[%s9 + $0x74] sm:$0xf]
  %v959 = vld [vmem:[%s9 + $0x78] sm:$0xf]
  %v960 = vld [vmem:[%s9 + $0x7c] sm:$0xf]
  %v961 = vld [vmem:[%s10] sm:$0x1]
  %v963 = vlaneseq
  %v964 = vshrl.u32 %v963, 7
  %v965 = vsub.s32 0, %v964
  %v966 = vrot.slane %v961, %v965
  %v1000 = vunpack.c.l.b16 %v929
  %v1001 = vunpack.c.l.b16 %v930
  %v1002 = vunpack.c.l.b16 %v931
  %v1003 = vunpack.c.l.b16 %v932
  %v1004 = vunpack.c.l.b16 %v933
  %v1005 = vunpack.c.l.b16 %v934
  %v1006 = vunpack.c.l.b16 %v935
  %v1007 = vunpack.c.l.b16 %v936
  %v1008 = vunpack.c.l.b16 %v937
  %v1009 = vunpack.c.l.b16 %v938
  %v1010 = vunpack.c.l.b16 %v939
  %v1011 = vunpack.c.l.b16 %v940
  %v1012 = vunpack.c.l.b16 %v941
  %v1013 = vunpack.c.l.b16 %v942
  %v1014 = vunpack.c.l.b16 %v943
  %v1015 = vunpack.c.l.b16 %v944
  %v1016 = vunpack.c.l.b16 %v945
  %v1017 = vunpack.c.l.b16 %v946
  %v1018 = vunpack.c.l.b16 %v947
  %v1019 = vunpack.c.l.b16 %v948
  %v1020 = vunpack.c.l.b16 %v949
  %v1021 = vunpack.c.l.b16 %v950
  %v1022 = vunpack.c.l.b16 %v951
  %v1023 = vunpack.c.l.b16 %v952
  %v1024 = vunpack.c.l.b16 %v953
  %v1025 = vunpack.c.l.b16 %v954
  %v1026 = vunpack.c.l.b16 %v955
  %v1027 = vunpack.c.l.b16 %v956
  %v1028 = vunpack.c.l.b16 %v957
  %v1029 = vunpack.c.l.b16 %v958
  %v1030 = vunpack.c.l.b16 %v959
  %v1031 = vunpack.c.l.b16 %v960
  %v1032 = vpack.c.b16 %v1001, %v1000
  %v1033 = vpack.c.b16 %v1003, %v1002
  %v1034 = vpack.c.b16 %v1005, %v1004
  %v1035 = vpack.c.b16 %v1007, %v1006
  %v1036 = vpack.c.b16 %v1009, %v1008
  %v1037 = vpack.c.b16 %v1011, %v1010
  %v1038 = vpack.c.b16 %v1013, %v1012
  %v1039 = vpack.c.b16 %v1015, %v1014
  %v1040 = vpack.c.b16 %v1017, %v1016
  %v1041 = vpack.c.b16 %v1019, %v1018
  %v1042 = vpack.c.b16 %v1021, %v1020
  %v1043 = vpack.c.b16 %v1023, %v1022
  %v1044 = vpack.c.b16 %v1025, %v1024
  %v1045 = vpack.c.b16 %v1027, %v1026
  %v1046 = vpack.c.b16 %v1029, %v1028
  %v1047 = vpack.c.b16 %v1031, %v1030
  %1064 = vmatprep.subr.bf16.mxu0 0
  %1065 = vmatpush1.bf16.msra.mxu0 %v1039
  %1066 = vmatprep.subr.bf16.mxu0 0
  %1067 = vmatpush1.bf16.msra.mxu0 %v1038
  %1068 = vmatprep.subr.bf16.mxu0 0
  %1069 = vmatpush1.bf16.msra.mxu0 %v1037
  %1070 = vmatprep.subr.bf16.mxu0 0
  %1071 = vmatpush1.bf16.msra.mxu0 %v1036
  %1072 = vmatprep.subr.bf16.mxu0 0
  %1073 = vmatpush1.bf16.msra.mxu0 %v1035
  %1074 = vmatprep.subr.bf16.mxu0 0
  %1075 = vmatpush1.bf16.msra.mxu0 %v1034
  %1076 = vmatprep.subr.bf16.mxu0 0
  %1077 = vmatpush1.bf16.msra.mxu0 %v1033
  %1078 = vmatprep.subr.bf16.mxu0 0
  %1079 = vmatpush1.bf16.msra.mxu0 %v1032
  %1080 = vmatprep.subr.bf16.mxu0 0
  %1081 = vmatpush2.bf16.msra.mxu0 %v1047
  %1082 = vmatprep.subr.bf16.mxu0 0
  %1083 = vmatpush2.bf16.msra.mxu0 %v1046
  %1084 = vmatprep.subr.bf16.mxu0 0
  %1085 = vmatpush2.bf16.msra.mxu0 %v1045
  %1086 = vmatprep.subr.bf16.mxu0 0
  %1087 = vmatpush2.bf16.msra.mxu0 %v1044
  %1088 = vmatprep.subr.bf16.mxu0 0
  %1089 = vmatpush2.bf16.msra.mxu0 %v1043
  %1090 = vmatprep.subr.bf16.mxu0 0
  %1091 = vmatpush2.bf16.msra.mxu0 %v1042
  %1092 = vmatprep.subr.bf16.mxu0 0
  %1093 = vmatpush2.bf16.msra.mxu0 %v1041
  %1094 = vmatprep.subr.bf16.mxu0 0
  %1095 = vmatpush2.bf16.msra.mxu0 %v1040
  %1096 = vmatprep.mubr.bf16.mxu0 %v928
  %1097 = vmatmul.mubr.bf16.gmra.mxu0 %v927
  %v1098 = vpop.f32.mrf.mxu0
  %v1099 = vadd.f32 %v966, %v1098
  %v1100 = vpop.f32.mrf.mxu0
  %v1101 = vpop.f32.mrf.mxu0
  %v1102 = vpop.f32.mrf.mxu0
  %1103 = vdwg.mxu0
  %v1104 = vtanh.pop %v1099
  %v1105 = vadd.f32 %v1104, 1.0
  %v1106 = vmul.f32 %v1105, 4.6051702
  %v1107 = vadd.f32 %v1106, -9.2103405
  %v1108 = vmul.f32 %v1107, 0.5
  %v1109 = vmul.f32 %v1108, 1.442695
  %v1110 = vpow.pop %v1109
  %v1111 = vlaneseq
  %v1112 = vand.u32 %v1111, 127
  %vm1113 = vcmp.lt.s32.totalorder %v1112, 2
  %v1114 = vsel %vm1113, %v1104, %v1110
  %vm1115 = vcmask 31744
  %1116 = vst.msk [vmem:[%s11] sm:$0xff] %vm1115, %v1114
  // Predicated region
  $region46: #{push_nn_privileged_actor.1} parent=0 // pred_check
    _
  $region47: #{push_nn_privileged_actor.1} parent=0 // pred_check_branch
    %1118 = sbr.rel (0) target = $region49
  $region48: #{push_nn_privileged_actor.1} parent=0 // pred_region
    _
  $region49: #{push_nn_privileged_actor.1} parent=0 // pred_fallthru
    _
  // Predicated region
  $region50: #{push_nn_privileged_actor.1} parent=0 // pred_check
    _
  $region51: #{push_nn_privileged_actor.1} parent=0 // pred_check_branch
    %1120 = sbr.rel (0) target = $region53
  $region52: #{push_nn_privileged_actor.1} parent=0 // pred_region
    _
  $region53: #{push_nn_privileged_actor.1} parent=0 // pred_fallthru
    _

// kernel: push_nn_privileged_actor.1
$region0: #{push_nn_privileged_actor.1}
  #allocation0 [shape = 'u32[]', space=smem, size = 0x4, offset = 0x4, fixed_abs, tag = 'smem constant byte address 0x4 - core index']
  #allocation1 [shape = 'u32[144,128]{1,0:T(1,128)}', space=vmem, size = 0x12000, scoped, tag = 'internal scratch']
  %s0 = inlined_call_operand.vmem [shape: f32[8,9], index: 0, kind: input, shape index: {}]
  %s1 = inlined_call_operand.vmem [shape: bf16[9,256], index: 1, kind: input, shape index: {}]
  %s2 = inlined_call_operand.vmem [shape: f32[1,256], index: 2, kind: input, shape index: {}]
  %s3 = inlined_call_operand.vmem [shape: bf16[256,256], index: 3, kind: input, shape index: {}]
  %s4 = inlined_call_operand.vmem [shape: f32[1,256], index: 4, kind: input, shape index: {}]
  %s5 = inlined_call_operand.vmem [shape: bf16[256,256], index: 5, kind: input, shape index: {}]
  %s6 = inlined_call_operand.vmem [shape: f32[1,256], index: 6, kind: input, shape index: {}]
  %s7 = inlined_call_operand.vmem [shape: bf16[256,256], index: 7, kind: input, shape index: {}]
  %s8 = inlined_call_operand.vmem [shape: f32[1,256], index: 8, kind: input, shape index: {}]
  %s9 = inlined_call_operand.vmem [shape: bf16[256,4], index: 9, kind: input, shape index: {}]
  %s10 = inlined_call_operand.vmem [shape: f32[1,4], index: 10, kind: input, shape index: {}]
  %s11 = inlined_call_operand.vmem [shape: f32[8,4], index: 11, kind: output, shape index: {}]
  %s12 = sld [smem:[#allocation0]]
  $region54: #{push_nn_privileged_actor.1} parent=0
    _
  %s14 = ssub.s32 1, %s12
  %s15 = scalar_select 0, %s14, %s12
  // Predicated region
  $region2: #{push_nn_privileged_actor.1} parent=0 // pred_check
    _
  $region3: #{push_nn_privileged_actor.1} parent=0 // pred_check_branch
    %17 = sbr.rel (0) target = $region5
  $region4: #{push_nn_privileged_actor.1} parent=0 // pred_region
    _
  $region5: #{push_nn_privileged_actor.1} parent=0 // pred_fallthru
    _
  // Predicated region
  $region6: #{push_nn_privileged_actor.1} parent=0 // pred_check
    _
  $region7: #{push_nn_privileged_actor.1} parent=0 // pred_check_branch
    %19 = sbr.rel (0) target = $region9
  $region8: #{push_nn_privileged_actor.1} parent=0 // pred_region
    _
  $region9: #{push_nn_privileged_actor.1} parent=0 // pred_fallthru
    _
  // Predicated region
  $region10: #{push_nn_privileged_actor.1} parent=0 // pred_check
    _
  $region11: #{push_nn_privileged_actor.1} parent=0 // pred_check_branch
    %21 = sbr.rel (0) target = $region13
  $region12: #{push_nn_privileged_actor.1} parent=0 // pred_region
    _
  $region13: #{push_nn_privileged_actor.1} parent=0 // pred_fallthru
    _
  // Predicated region
  $region14: #{push_nn_privileged_actor.1} parent=0 // pred_check
    _
  $region15: #{push_nn_privileged_actor.1} parent=0 // pred_check_branch
    %23 = sbr.rel (0) target = $region17
  $region16: #{push_nn_privileged_actor.1} parent=0 // pred_region
    _
  $region17: #{push_nn_privileged_actor.1} parent=0 // pred_fallthru
    _
  // Predicated region
  $region18: #{push_nn_privileged_actor.1} parent=0 // pred_check
    _
  $region19: #{push_nn_privileged_actor.1} parent=0 // pred_check_branch
    %25 = sbr.rel (0) target = $region21
  $region20: #{push_nn_privileged_actor.1} parent=0 // pred_region
    _
  $region21: #{push_nn_privileged_actor.1} parent=0 // pred_fallthru
    _
  // Predicated region
  $region22: #{push_nn_privileged_actor.1} parent=0 // pred_check
    _
  $region23: #{push_nn_privileged_actor.1} parent=0 // pred_check_branch
    %27 = sbr.rel (0) target = $region25
  $region24: #{push_nn_privileged_actor.1} parent=0 // pred_region
    _
  $region25: #{push_nn_privileged_actor.1} parent=0 // pred_fallthru
    _
  // Predicated region
  $region26: #{push_nn_privileged_actor.1} parent=0 // pred_check
    _
  $region27: #{push_nn_privileged_actor.1} parent=0 // pred_check_branch
    %29 = sbr.rel (0) target = $region29
  $region28: #{push_nn_privileged_actor.1} parent=0 // pred_region
    _
  $region29: #{push_nn_privileged_actor.1} parent=0 // pred_fallthru
    _
  // Predicated region
  $region30: #{push_nn_privileged_actor.1} parent=0 // pred_check
    _
  $region31: #{push_nn_privileged_actor.1} parent=0 // pred_check_branch
    %31 = sbr.rel (0) target = $region33
  $region32: #{push_nn_privileged_actor.1} parent=0 // pred_region
    _
  $region33: #{push_nn_privileged_actor.1} parent=0 // pred_fallthru
    _
  // Predicated region
  $region34: #{push_nn_privileged_actor.1} parent=0 // pred_check
    _
  $region35: #{push_nn_privileged_actor.1} parent=0 // pred_check_branch
    %33 = sbr.rel (0) target = $region37
  $region36: #{push_nn_privileged_actor.1} parent=0 // pred_region
    _
  $region37: #{push_nn_privileged_actor.1} parent=0 // pred_fallthru
    _
  // Predicated region
  $region38: #{push_nn_privileged_actor.1} parent=0 // pred_check
    _
  $region39: #{push_nn_privileged_actor.1} parent=0 // pred_check_branch
    %35 = sbr.rel (0) target = $region41
  $region40: #{push_nn_privileged_actor.1} parent=0 // pred_region
    _
  $region41: #{push_nn_privileged_actor.1} parent=0 // pred_fallthru
    _
  // Predicated region
  $region42: #{push_nn_privileged_actor.1} parent=0 // pred_check
    _
  $region43: #{push_nn_privileged_actor.1} parent=0 // pred_check_branch
    %37 = sbr.rel (0) target = $region45
  $region44: #{push_nn_privileged_actor.1} parent=0 // pred_region
    _
  $region45: #{push_nn_privileged_actor.1} parent=0 // pred_fallthru
    _
  %v39 = vld [vmem:[%s0] sm:$0xff]
  %v40 = vpack.c.bf16 %v39, %v39
  %v41 = vld [vmem:[%s1] sm:$0xff]
  %v42 = vld [vmem:[%s1 + $0x8] sm:$0x11]
  %v43 = vld [vmem:[%s2] sm:$0x3]
  %v45 = vlaneseq
  %v46 = vshrl.u32 %v45, 7
  %v47 = vsub.s32 0, %v46
  %v48 = vrot.slane %v43, %v47
  %v49 = vlaneseq
  %v50 = vshrl.u32 %v49, 7
  %v51 = vsub.s32 1, %v50
  %v52 = vrot.slane %v43, %v51
  %v57 = vunpack.c.l.b16 %v41
  %v58 = vunpack.c.h.b16 %v41
  %v59 = vunpack.c.l.b16 %v42
  %v60 = vunpack.c.h.b16 %v42
  %v61 = vpack.c.b16 %v59, %v57
  %v62 = vpack.c.b16 %v60, %v58
  %vm63 = vcmask 72704
  %v65 = vsel %vm63, %v40, 0
  %vm67 = vcmask 1043456
  %vm68 = vcmask 1044480
  %v69 = vsel %vm67, 4294967295, 65535
  %v70 = vsel %vm68, %v69, 0
  %v72 = vand.u32 %v61, %v70
  %v75 = vand.u32 %v62, %v70
  %77 = vmatprep.subr.bf16.mxu0 0
  %78 = vmatpush1.bf16.msra.mxu0 0
  %79 = vmatprep.subr.bf16.mxu0 0
  %80 = vmatpush1.bf16.msra.mxu0 0
  %81 = vmatprep.subr.bf16.mxu0 0
  %82 = vmatpush1.bf16.msra.mxu0 0
  %83 = vmatprep.subr.bf16.mxu0 0
  %84 = vmatpush1.bf16.msra.mxu0 0
  %85 = vmatprep.subr.bf16.mxu0 0
  %86 = vmatpush1.bf16.msra.mxu0 0
  %87 = vmatprep.subr.bf16.mxu0 0
  %88 = vmatpush1.bf16.msra.mxu0 0
  %89 = vmatprep.subr.bf16.mxu0 0
  %90 = vmatpush1.bf16.msra.mxu0 0
  %91 = vmatprep.subr.bf16.mxu0 %v75
  %92 = vmatpush1.bf16.msra.mxu0 %v72
  %93 = vmatprep.subr.bf16.mxu0 0
  %94 = vmatpush2.bf16.msra.mxu0 0
  %95 = vmatprep.subr.bf16.mxu0 0
  %96 = vmatpush2.bf16.msra.mxu0 0
  %97 = vmatprep.subr.bf16.mxu0 0
  %98 = vmatpush2.bf16.msra.mxu0 0
  %99 = vmatprep.subr.bf16.mxu0 0
  %100 = vmatpush2.bf16.msra.mxu0 0
  %101 = vmatprep.subr.bf16.mxu0 0
  %102 = vmatpush2.bf16.msra.mxu0 0
  %103 = vmatprep.subr.bf16.mxu0 0
  %104 = vmatpush2.bf16.msra.mxu0 0
  %105 = vmatprep.subr.bf16.mxu0 0
  %106 = vmatpush2.bf16.msra.mxu0 0
  %107 = vmatprep.subr.bf16.mxu0 0
  %108 = vmatpush2.bf16.msra.mxu0 0
  %109 = vmatprep.mubr.bf16.mxu0 0
  %110 = vmatmul.mubr.bf16.gmra.mxu0 %v65
  %v111 = vpop.f32.mrf.mxu0
  %v112 = vadd.f32 %v48, %v111
  %v113 = vpop.f32.mrf.mxu0
  %v114 = vadd.f32 %v52, %v113
  %v115 = vpop.f32.mrf.mxu0
  %v116 = vpop.f32.mrf.mxu0
  %117 = vdwg.mxu0
  %v118 = vmin.f32 %v112, 20.0
  %v119 = vmin.f32 %v114, 20.0
  %v120 = vmul.f32 %v118, 1.442695
  %v121 = vpow.pop %v120
  %v122 = vmul.f32 %v119, 1.442695
  %v123 = vpow.pop %v122
  %v124 = vadd.f32 %v121, 2.0
  %v125 = vadd.f32 %v123, 2.0
  %v126 = vmul.f32 %v121, %v124
  %v127 = vmul.f32 %v123, %v125
  %v128 = vmul.f32 %v112, %v126
  %v129 = vmul.f32 %v114, %v127
  %v130 = vadd.f32 %v126, 2.0
  %v131 = vadd.f32 %v127, 2.0
  %v132 = vrcp.pop %v130
  %v133 = vrcp.pop %v131
  %v134 = vmul.f32 %v128, %v132
  %v135 = vmul.f32 %v129, %v133
  %vm136 = vcmp.gt.f32.partialorder %v112, 20.0
  %vm137 = vcmp.gt.f32.partialorder %v114, 20.0
  %v138 = vsel %vm136, %v112, %v134
  %v139 = vsel %vm137, %v114, %v135
  %v140 = vpack.c.bf16 %v138, %v138
  %v141 = vpack.c.bf16 %v139, %v139
  %v142 = vld [vmem:[%s3] sm:$0xff]
  %v143 = vld [vmem:[%s3 + $0x8] sm:$0xff]
  %v144 = vld [vmem:[%s3 + $0x10] sm:$0xff]
  %v145 = vld [vmem:[%s3 + $0x18] sm:$0xff]
  %v146 = vld [vmem:[%s3 + $0x20] sm:$0xff]
  %v147 = vld [vmem:[%s3 + $0x28] sm:$0xff]
  %v148 = vld [vmem:[%s3 + $0x30] sm:$0xff]
  %v149 = vld [vmem:[%s3 + $0x38] sm:$0xff]
  %v150 = vld [vmem:[%s3 + $0x40] sm:$0xff]
  %v151 = vld [vmem:[%s3 + $0x48] sm:$0xff]
  %v152 = vld [vmem:[%s3 + $0x50] sm:$0xff]
  %v153 = vld [vmem:[%s3 + $0x58] sm:$0xff]
  %v154 = vld [vmem:[%s3 + $0x60] sm:$0xff]
  %v155 = vld [vmem:[%s3 + $0x68] sm:$0xff]
  %v156 = vld [vmem:[%s3 + $0x70] sm:$0xff]
  %v157 = vld [vmem:[%s3 + $0x78] sm:$0xff]
  %v158 = vld [vmem:[%s3 + $0x80] sm:$0xff]
  %v159 = vld [vmem:[%s3 + $0x88] sm:$0xff]
  %v160 = vld [vmem:[%s3 + $0x90] sm:$0xff]
  %v161 = vld [vmem:[%s3 + $0x98] sm:$0xff]
  %v162 = vld [vmem:[%s3 + $0xa0] sm:$0xff]
  %v163 = vld [vmem:[%s3 + $0xa8] sm:$0xff]
  %v164 = vld [vmem:[%s3 + $0xb0] sm:$0xff]
  %v165 = vld [vmem:[%s3 + $0xb8] sm:$0xff]
  %v166 = vld [vmem:[%s3 + $0xc0] sm:$0xff]
  %v167 = vld [vmem:[%s3 + $0xc8] sm:$0xff]
  %v168 = vld [vmem:[%s3 + $0xd0] sm:$0xff]
  %v169 = vld [vmem:[%s3 + $0xd8] sm:$0xff]
  %v170 = vld [vmem:[%s3 + $0xe0] sm:$0xff]
  %v171 = vld [vmem:[%s3 + $0xe8] sm:$0xff]
  %v172 = vld [vmem:[%s3 + $0xf0] sm:$0xff]
  %v173 = vld [vmem:[%s3 + $0xf8] sm:$0xff]
  %v174 = vld [vmem:[%s4] sm:$0x3]
  %v176 = vlaneseq
  %v177 = vshrl.u32 %v176, 7
  %v178 = vsub.s32 0, %v177
  %v179 = vrot.slane %v174, %v178
  %v180 = vlaneseq
  %v181 = vshrl.u32 %v180, 7
  %v182 = vsub.s32 1, %v181
  %v183 = vrot.slane %v174, %v182
  %v218 = vunpack.c.l.b16 %v142
  %v219 = vunpack.c.h.b16 %v142
  %v220 = vunpack.c.l.b16 %v143
  %v221 = vunpack.c.h.b16 %v143
  %v222 = vunpack.c.l.b16 %v144
  %v223 = vunpack.c.h.b16 %v144
  %v224 = vunpack.c.l.b16 %v145
  %v225 = vunpack.c.h.b16 %v145
  %v226 = vunpack.c.l.b16 %v146
  %v227 = vunpack.c.h.b16 %v146
  %v228 = vunpack.c.l.b16 %v147
  %v229 = vunpack.c.h.b16 %v147
  %v230 = vunpack.c.l.b16 %v148
  %v231 = vunpack.c.h.b16 %v148
  %v232 = vunpack.c.l.b16 %v149
  %v233 = vunpack.c.h.b16 %v149
  %v234 = vunpack.c.l.b16 %v150
  %v235 = vunpack.c.h.b16 %v150
  %v236 = vunpack.c.l.b16 %v151
  %v237 = vunpack.c.h.b16 %v151
  %v238 = vunpack.c.l.b16 %v152
  %v239 = vunpack.c.h.b16 %v152
  %v240 = vunpack.c.l.b16 %v153
  %v241 = vunpack.c.h.b16 %v153
  %v242 = vunpack.c.l.b16 %v154
  %v243 = vunpack.c.h.b16 %v154
  %v244 = vunpack.c.l.b16 %v155
  %v245 = vunpack.c.h.b16 %v155
  %v246 = vunpack.c.l.b16 %v156
  %v247 = vunpack.c.h.b16 %v156
  %v248 = vunpack.c.l.b16 %v157
  %v249 = vunpack.c.h.b16 %v157
  %v250 = vunpack.c.l.b16 %v158
  %v251 = vunpack.c.h.b16 %v158
  %v252 = vunpack.c.l.b16 %v159
  %v253 = vunpack.c.h.b16 %v159
  %v254 = vunpack.c.l.b16 %v160
  %v255 = vunpack.c.h.b16 %v160
  %v256 = vunpack.c.l.b16 %v161
  %v257 = vunpack.c.h.b16 %v161
  %v258 = vunpack.c.l.b16 %v162
  %v259 = vunpack.c.h.b16 %v162
  %v260 = vunpack.c.l.b16 %v163
  %v261 = vunpack.c.h.b16 %v163
  %v262 = vunpack.c.l.b16 %v164
  %v263 = vunpack.c.h.b16 %v164
  %v264 = vunpack.c.l.b16 %v165
  %v265 = vunpack.c.h.b16 %v165
  %v266 = vunpack.c.l.b16 %v166
  %v267 = vunpack.c.h.b16 %v166
  %v268 = vunpack.c.l.b16 %v167
  %v269 = vunpack.c.h.b16 %v167
  %v270 = vunpack.c.l.b16 %v168
  %v271 = vunpack.c.h.b16 %v168
  %v272 = vunpack.c.l.b16 %v169
  %v273 = vunpack.c.h.b16 %v169
  %v274 = vunpack.c.l.b16 %v170
  %v275 = vunpack.c.h.b16 %v170
  %v276 = vunpack.c.l.b16 %v171
  %v277 = vunpack.c.h.b16 %v171
  %v278 = vunpack.c.l.b16 %v172
  %v279 = vunpack.c.h.b16 %v172
  %v280 = vunpack.c.l.b16 %v173
  %v281 = vunpack.c.h.b16 %v173
  %v282 = vpack.c.b16 %v220, %v218
  %v283 = vpack.c.b16 %v221, %v219
  %v284 = vpack.c.b16 %v224, %v222
  %v285 = vpack.c.b16 %v225, %v223
  %v286 = vpack.c.b16 %v228, %v226
  %v287 = vpack.c.b16 %v229, %v227
  %v288 = vpack.c.b16 %v232, %v230
  %v289 = vpack.c.b16 %v233, %v231
  %v290 = vpack.c.b16 %v236, %v234
  %v291 = vpack.c.b16 %v237, %v235
  %v292 = vpack.c.b16 %v240, %v238
  %v293 = vpack.c.b16 %v241, %v239
  %v294 = vpack.c.b16 %v244, %v242
  %v295 = vpack.c.b16 %v245, %v243
  %v296 = vpack.c.b16 %v248, %v246
  %v297 = vpack.c.b16 %v249, %v247
  %v298 = vpack.c.b16 %v252, %v250
  %v299 = vpack.c.b16 %v253, %v251
  %v300 = vpack.c.b16 %v256, %v254
  %v301 = vpack.c.b16 %v257, %v255
  %v302 = vpack.c.b16 %v260, %v258
  %v303 = vpack.c.b16 %v261, %v259
  %v304 = vpack.c.b16 %v264, %v262
  %v305 = vpack.c.b16 %v265, %v263
  %v306 = vpack.c.b16 %v268, %v266
  %v307 = vpack.c.b16 %v269, %v267
  %v308 = vpack.c.b16 %v272, %v270
  %v309 = vpack.c.b16 %v273, %v271
  %v310 = vpack.c.b16 %v276, %v274
  %v311 = vpack.c.b16 %v277, %v275
  %v312 = vpack.c.b16 %v280, %v278
  %v313 = vpack.c.b16 %v281, %v279
  %346 = vmatprep.subr.bf16.mxu0 %v297
  %347 = vmatpush1.bf16.msra.mxu0 %v296
  %348 = vmatprep.subr.bf16.mxu0 %v295
  %349 = vmatpush1.bf16.msra.mxu0 %v294
  %350 = vmatprep.subr.bf16.mxu0 %v293
  %351 = vmatpush1.bf16.msra.mxu0 %v292
  %352 = vmatprep.subr.bf16.mxu0 %v291
  %353 = vmatpush1.bf16.msra.mxu0 %v290
  %354 = vmatprep.subr.bf16.mxu0 %v289
  %355 = vmatpush1.bf16.msra.mxu0 %v288
  %356 = vmatprep.subr.bf16.mxu0 %v287
  %357 = vmatpush1.bf16.msra.mxu0 %v286
  %358 = vmatprep.subr.bf16.mxu0 %v285
  %359 = vmatpush1.bf16.msra.mxu0 %v284
  %360 = vmatprep.subr.bf16.mxu0 %v283
  %361 = vmatpush1.bf16.msra.mxu0 %v282
  %362 = vmatprep.subr.bf16.mxu0 %v313
  %363 = vmatpush2.bf16.msra.mxu0 %v312
  %364 = vmatprep.subr.bf16.mxu0 %v311
  %365 = vmatpush2.bf16.msra.mxu0 %v310
  %366 = vmatprep.subr.bf16.mxu0 %v309
  %367 = vmatpush2.bf16.msra.mxu0 %v308
  %368 = vmatprep.subr.bf16.mxu0 %v307
  %369 = vmatpush2.bf16.msra.mxu0 %v306
  %370 = vmatprep.subr.bf16.mxu0 %v305
  %371 = vmatpush2.bf16.msra.mxu0 %v304
  %372 = vmatprep.subr.bf16.mxu0 %v303
  %373 = vmatpush2.bf16.msra.mxu0 %v302
  %374 = vmatprep.subr.bf16.mxu0 %v301
  %375 = vmatpush2.bf16.msra.mxu0 %v300
  %376 = vmatprep.subr.bf16.mxu0 %v299
  %377 = vmatpush2.bf16.msra.mxu0 %v298
  %378 = vmatprep.mubr.bf16.mxu0 %v141
  %379 = vmatmul.mubr.bf16.gmra.mxu0 %v140
  %v380 = vpop.f32.mrf.mxu0
  %v381 = vadd.f32 %v179, %v380
  %v382 = vpop.f32.mrf.mxu0
  %v383 = vadd.f32 %v183, %v382
  %v384 = vpop.f32.mrf.mxu0
  %v385 = vpop.f32.mrf.mxu0
  %386 = vdwg.mxu0
  %v387 = vmin.f32 %v381, 20.0
  %v388 = vmin.f32 %v383, 20.0
  %v389 = vmul.f32 %v387, 1.442695
  %v390 = vpow.pop %v389
  %v391 = vmul.f32 %v388, 1.442695
  %v392 = vpow.pop %v391
  %v393 = vadd.f32 %v390, 2.0
  %v394 = vadd.f32 %v392, 2.0
  %v395 = vmul.f32 %v390, %v393
  %v396 = vmul.f32 %v392, %v394
  %v397 = vmul.f32 %v381, %v395
  %v398 = vmul.f32 %v383, %v396
  %v399 = vadd.f32 %v395, 2.0
  %v400 = vadd.f32 %v396, 2.0
  %v401 = vrcp.pop %v399
  %v402 = vrcp.pop %v400
  %v403 = vmul.f32 %v397, %v401
  %v404 = vmul.f32 %v398, %v402
  %vm405 = vcmp.gt.f32.partialorder %v381, 20.0
  %vm406 = vcmp.gt.f32.partialorder %v383, 20.0
  %v407 = vsel %vm405, %v381, %v403
  %v408 = vsel %vm406, %v383, %v404
  %v409 = vpack.c.bf16 %v407, %v407
  %v410 = vpack.c.bf16 %v408, %v408
  %v411 = vld [vmem:[%s5] sm:$0xff]
  %v412 = vld [vmem:[%s5 + $0x8] sm:$0xff]
  %v413 = vld [vmem:[%s5 + $0x10] sm:$0xff]
  %v414 = vld [vmem:[%s5 + $0x18] sm:$0xff]
  %v415 = vld [vmem:[%s5 + $0x20] sm:$0xff]
  %v416 = vld [vmem:[%s5 + $0x28] sm:$0xff]
  %v417 = vld [vmem:[%s5 + $0x30] sm:$0xff]
  %v418 = vld [vmem:[%s5 + $0x38] sm:$0xff]
  %v419 = vld [vmem:[%s5 + $0x40] sm:$0xff]
  %v420 = vld [vmem:[%s5 + $0x48] sm:$0xff]
  %v421 = vld [vmem:[%s5 + $0x50] sm:$0xff]
  %v422 = vld [vmem:[%s5 + $0x58] sm:$0xff]
  %v423 = vld [vmem:[%s5 + $0x60] sm:$0xff]
  %v424 = vld [vmem:[%s5 + $0x68] sm:$0xff]
  %v425 = vld [vmem:[%s5 + $0x70] sm:$0xff]
  %v426 = vld [vmem:[%s5 + $0x78] sm:$0xff]
  %v427 = vld [vmem:[%s5 + $0x80] sm:$0xff]
  %v428 = vld [vmem:[%s5 + $0x88] sm:$0xff]
  %v429 = vld [vmem:[%s5 + $0x90] sm:$0xff]
  %v430 = vld [vmem:[%s5 + $0x98] sm:$0xff]
  %v431 = vld [vmem:[%s5 + $0xa0] sm:$0xff]
  %v432 = vld [vmem:[%s5 + $0xa8] sm:$0xff]
  %v433 = vld [vmem:[%s5 + $0xb0] sm:$0xff]
  %v434 = vld [vmem:[%s5 + $0xb8] sm:$0xff]
  %v435 = vld [vmem:[%s5 + $0xc0] sm:$0xff]
  %v436 = vld [vmem:[%s5 + $0xc8] sm:$0xff]
  %v437 = vld [vmem:[%s5 + $0xd0] sm:$0xff]
  %v438 = vld [vmem:[%s5 + $0xd8] sm:$0xff]
  %v439 = vld [vmem:[%s5 + $0xe0] sm:$0xff]
  %v440 = vld [vmem:[%s5 + $0xe8] sm:$0xff]
  %v441 = vld [vmem:[%s5 + $0xf0] sm:$0xff]
  %v442 = vld [vmem:[%s5 + $0xf8] sm:$0xff]
  %v443 = vld [vmem:[%s6] sm:$0x3]
  %v445 = vlaneseq
  %v446 = vshrl.u32 %v445, 7
  %v447 = vsub.s32 0, %v446
  %v448 = vrot.slane %v443, %v447
  %v449 = vlaneseq
  %v450 = vshrl.u32 %v449, 7
  %v451 = vsub.s32 1, %v450
  %v452 = vrot.slane %v443, %v451
  %v487 = vunpack.c.l.b16 %v411
  %v488 = vunpack.c.h.b16 %v411
  %v489 = vunpack.c.l.b16 %v412
  %v490 = vunpack.c.h.b16 %v412
  %v491 = vunpack.c.l.b16 %v413
  %v492 = vunpack.c.h.b16 %v413
  %v493 = vunpack.c.l.b16 %v414
  %v494 = vunpack.c.h.b16 %v414
  %v495 = vunpack.c.l.b16 %v415
  %v496 = vunpack.c.h.b16 %v415
  %v497 = vunpack.c.l.b16 %v416
  %v498 = vunpack.c.h.b16 %v416
  %v499 = vunpack.c.l.b16 %v417
  %v500 = vunpack.c.h.b16 %v417
  %v501 = vunpack.c.l.b16 %v418
  %v502 = vunpack.c.h.b16 %v418
  %v503 = vunpack.c.l.b16 %v419
  %v504 = vunpack.c.h.b16 %v419
  %v505 = vunpack.c.l.b16 %v420
  %v506 = vunpack.c.h.b16 %v420
  %v507 = vunpack.c.l.b16 %v421
  %v508 = vunpack.c.h.b16 %v421
  %v509 = vunpack.c.l.b16 %v422
  %v510 = vunpack.c.h.b16 %v422
  %v511 = vunpack.c.l.b16 %v423
  %v512 = vunpack.c.h.b16 %v423
  %v513 = vunpack.c.l.b16 %v424
  %v514 = vunpack.c.h.b16 %v424
  %v515 = vunpack.c.l.b16 %v425
  %v516 = vunpack.c.h.b16 %v425
  %v517 = vunpack.c.l.b16 %v426
  %v518 = vunpack.c.h.b16 %v426
  %v519 = vunpack.c.l.b16 %v427
  %v520 = vunpack.c.h.b16 %v427
  %v521 = vunpack.c.l.b16 %v428
  %v522 = vunpack.c.h.b16 %v428
  %v523 = vunpack.c.l.b16 %v429
  %v524 = vunpack.c.h.b16 %v429
  %v525 = vunpack.c.l.b16 %v430
  %v526 = vunpack.c.h.b16 %v430
  %v527 = vunpack.c.l.b16 %v431
  %v528 = vunpack.c.h.b16 %v431
  %v529 = vunpack.c.l.b16 %v432
  %v530 = vunpack.c.h.b16 %v432
  %v531 = vunpack.c.l.b16 %v433
  %v532 = vunpack.c.h.b16 %v433
  %v533 = vunpack.c.l.b16 %v434
  %v534 = vunpack.c.h.b16 %v434
  %v535 = vunpack.c.l.b16 %v435
  %v536 = vunpack.c.h.b16 %v435
  %v537 = vunpack.c.l.b16 %v436
  %v538 = vunpack.c.h.b16 %v436
  %v539 = vunpack.c.l.b16 %v437
  %v540 = vunpack.c.h.b16 %v437
  %v541 = vunpack.c.l.b16 %v438
  %v542 = vunpack.c.h.b16 %v438
  %v543 = vunpack.c.l.b16 %v439
  %v544 = vunpack.c.h.b16 %v439
  %v545 = vunpack.c.l.b16 %v440
  %v546 = vunpack.c.h.b16 %v440
  %v547 = vunpack.c.l.b16 %v441
  %v548 = vunpack.c.h.b16 %v441
  %v549 = vunpack.c.l.b16 %v442
  %v550 = vunpack.c.h.b16 %v442
  %v551 = vpack.c.b16 %v489, %v487
  %v552 = vpack.c.b16 %v490, %v488
  %v553 = vpack.c.b16 %v493, %v491
  %v554 = vpack.c.b16 %v494, %v492
  %v555 = vpack.c.b16 %v497, %v495
  %v556 = vpack.c.b16 %v498, %v496
  %v557 = vpack.c.b16 %v501, %v499
  %v558 = vpack.c.b16 %v502, %v500
  %v559 = vpack.c.b16 %v505, %v503
  %v560 = vpack.c.b16 %v506, %v504
  %v561 = vpack.c.b16 %v509, %v507
  %v562 = vpack.c.b16 %v510, %v508
  %v563 = vpack.c.b16 %v513, %v511
  %v564 = vpack.c.b16 %v514, %v512
  %v565 = vpack.c.b16 %v517, %v515
  %v566 = vpack.c.b16 %v518, %v516
  %v567 = vpack.c.b16 %v521, %v519
  %v568 = vpack.c.b16 %v522, %v520
  %v569 = vpack.c.b16 %v525, %v523
  %v570 = vpack.c.b16 %v526, %v524
  %v571 = vpack.c.b16 %v529, %v527
  %v572 = vpack.c.b16 %v530, %v528
  %v573 = vpack.c.b16 %v533, %v531
  %v574 = vpack.c.b16 %v534, %v532
  %v575 = vpack.c.b16 %v537, %v535
  %v576 = vpack.c.b16 %v538, %v536
  %v577 = vpack.c.b16 %v541, %v539
  %v578 = vpack.c.b16 %v542, %v540
  %v579 = vpack.c.b16 %v545, %v543
  %v580 = vpack.c.b16 %v546, %v544
  %v581 = vpack.c.b16 %v549, %v547
  %v582 = vpack.c.b16 %v550, %v548
  %615 = vmatprep.subr.bf16.mxu0 %v566
  %616 = vmatpush1.bf16.msra.mxu0 %v565
  %617 = vmatprep.subr.bf16.mxu0 %v564
  %618 = vmatpush1.bf16.msra.mxu0 %v563
  %619 = vmatprep.subr.bf16.mxu0 %v562
  %620 = vmatpush1.bf16.msra.mxu0 %v561
  %621 = vmatprep.subr.bf16.mxu0 %v560
  %622 = vmatpush1.bf16.msra.mxu0 %v559
  %623 = vmatprep.subr.bf16.mxu0 %v558
  %624 = vmatpush1.bf16.msra.mxu0 %v557
  %625 = vmatprep.subr.bf16.mxu0 %v556
  %626 = vmatpush1.bf16.msra.mxu0 %v555
  %627 = vmatprep.subr.bf16.mxu0 %v554
  %628 = vmatpush1.bf16.msra.mxu0 %v553
  %629 = vmatprep.subr.bf16.mxu0 %v552
  %630 = vmatpush1.bf16.msra.mxu0 %v551
  %631 = vmatprep.subr.bf16.mxu0 %v582
  %632 = vmatpush2.bf16.msra.mxu0 %v581
  %633 = vmatprep.subr.bf16.mxu0 %v580
  %634 = vmatpush2.bf16.msra.mxu0 %v579
  %635 = vmatprep.subr.bf16.mxu0 %v578
  %636 = vmatpush2.bf16.msra.mxu0 %v577
  %637 = vmatprep.subr.bf16.mxu0 %v576
  %638 = vmatpush2.bf16.msra.mxu0 %v575
  %639 = vmatprep.subr.bf16.mxu0 %v574
  %640 = vmatpush2.bf16.msra.mxu0 %v573
  %641 = vmatprep.subr.bf16.mxu0 %v572
  %642 = vmatpush2.bf16.msra.mxu0 %v571
  %643 = vmatprep.subr.bf16.mxu0 %v570
  %644 = vmatpush2.bf16.msra.mxu0 %v569
  %645 = vmatprep.subr.bf16.mxu0 %v568
  %646 = vmatpush2.bf16.msra.mxu0 %v567
  %647 = vmatprep.mubr.bf16.mxu0 %v410
  %648 = vmatmul.mubr.bf16.gmra.mxu0 %v409
  %v649 = vpop.f32.mrf.mxu0
  %v650 = vadd.f32 %v448, %v649
  %v651 = vpop.f32.mrf.mxu0
  %v652 = vadd.f32 %v452, %v651
  %v653 = vpop.f32.mrf.mxu0
  %v654 = vpop.f32.mrf.mxu0
  %655 = vdwg.mxu0
  %v656 = vadd.f32 %v650, %v112
  %v657 = vadd.f32 %v652, %v114
  %v658 = vpack.c.bf16 %v656, %v656
  %v659 = vpack.c.bf16 %v657, %v657
  %v660 = vld [vmem:[%s7] sm:$0xff]
  %v661 = vld [vmem:[%s7 + $0x8] sm:$0xff]
  %v662 = vld [vmem:[%s7 + $0x10] sm:$0xff]
  %v663 = vld [vmem:[%s7 + $0x18] sm:$0xff]
  %v664 = vld [vmem:[%s7 + $0x20] sm:$0xff]
  %v665 = vld [vmem:[%s7 + $0x28] sm:$0xff]
  %v666 = vld [vmem:[%s7 + $0x30] sm:$0xff]
  %v667 = vld [vmem:[%s7 + $0x38] sm:$0xff]
  %v668 = vld [vmem:[%s7 + $0x40] sm:$0xff]
  %v669 = vld [vmem:[%s7 + $0x48] sm:$0xff]
  %v670 = vld [vmem:[%s7 + $0x50] sm:$0xff]
  %v671 = vld [vmem:[%s7 + $0x58] sm:$0xff]
  %v672 = vld [vmem:[%s7 + $0x60] sm:$0xff]
  %v673 = vld [vmem:[%s7 + $0x68] sm:$0xff]
  %v674 = vld [vmem:[%s7 + $0x70] sm:$0xff]
  %v675 = vld [vmem:[%s7 + $0x78] sm:$0xff]
  %v676 = vld [vmem:[%s7 + $0x80] sm:$0xff]
  %v677 = vld [vmem:[%s7 + $0x88] sm:$0xff]
  %v678 = vld [vmem:[%s7 + $0x90] sm:$0xff]
  %v679 = vld [vmem:[%s7 + $0x98] sm:$0xff]
  %v680 = vld [vmem:[%s7 + $0xa0] sm:$0xff]
  %v681 = vld [vmem:[%s7 + $0xa8] sm:$0xff]
  %v682 = vld [vmem:[%s7 + $0xb0] sm:$0xff]
  %v683 = vld [vmem:[%s7 + $0xb8] sm:$0xff]
  %v684 = vld [vmem:[%s7 + $0xc0] sm:$0xff]
  %v685 = vld [vmem:[%s7 + $0xc8] sm:$0xff]
  %v686 = vld [vmem:[%s7 + $0xd0] sm:$0xff]
  %v687 = vld [vmem:[%s7 + $0xd8] sm:$0xff]
  %v688 = vld [vmem:[%s7 + $0xe0] sm:$0xff]
  %v689 = vld [vmem:[%s7 + $0xe8] sm:$0xff]
  %v690 = vld [vmem:[%s7 + $0xf0] sm:$0xff]
  %v691 = vld [vmem:[%s7 + $0xf8] sm:$0xff]
  %v692 = vld [vmem:[%s8] sm:$0x3]
  %v694 = vlaneseq
  %v695 = vshrl.u32 %v694, 7
  %v696 = vsub.s32 0, %v695
  %v697 = vrot.slane %v692, %v696
  %v698 = vlaneseq
  %v699 = vshrl.u32 %v698, 7
  %v700 = vsub.s32 1, %v699
  %v701 = vrot.slane %v692, %v700
  %v736 = vunpack.c.l.b16 %v660
  %v737 = vunpack.c.h.b16 %v660
  %v738 = vunpack.c.l.b16 %v661
  %v739 = vunpack.c.h.b16 %v661
  %v740 = vunpack.c.l.b16 %v662
  %v741 = vunpack.c.h.b16 %v662
  %v742 = vunpack.c.l.b16 %v663
  %v743 = vunpack.c.h.b16 %v663
  %v744 = vunpack.c.l.b16 %v664
  %v745 = vunpack.c.h.b16 %v664
  %v746 = vunpack.c.l.b16 %v665
  %v747 = vunpack.c.h.b16 %v665
  %v748 = vunpack.c.l.b16 %v666
  %v749 = vunpack.c.h.b16 %v666
  %v750 = vunpack.c.l.b16 %v667
  %v751 = vunpack.c.h.b16 %v667
  %v752 = vunpack.c.l.b16 %v668
  %v753 = vunpack.c.h.b16 %v668
  %v754 = vunpack.c.l.b16 %v669
  %v755 = vunpack.c.h.b16 %v669
  %v756 = vunpack.c.l.b16 %v670
  %v757 = vunpack.c.h.b16 %v670
  %v758 = vunpack.c.l.b16 %v671
  %v759 = vunpack.c.h.b16 %v671
  %v760 = vunpack.c.l.b16 %v672
  %v761 = vunpack.c.h.b16 %v672
  %v762 = vunpack.c.l.b16 %v673
  %v763 = vunpack.c.h.b16 %v673
  %v764 = vunpack.c.l.b16 %v674
  %v765 = vunpack.c.h.b16 %v674
  %v766 = vunpack.c.l.b16 %v675
  %v767 = vunpack.c.h.b16 %v675
  %v768 = vunpack.c.l.b16 %v676
  %v769 = vunpack.c.h.b16 %v676
  %v770 = vunpack.c.l.b16 %v677
  %v771 = vunpack.c.h.b16 %v677
  %v772 = vunpack.c.l.b16 %v678
  %v773 = vunpack.c.h.b16 %v678
  %v774 = vunpack.c.l.b16 %v679
  %v775 = vunpack.c.h.b16 %v679
  %v776 = vunpack.c.l.b16 %v680
  %v777 = vunpack.c.h.b16 %v680
  %v778 = vunpack.c.l.b16 %v681
  %v779 = vunpack.c.h.b16 %v681
  %v780 = vunpack.c.l.b16 %v682
  %v781 = vunpack.c.h.b16 %v682
  %v782 = vunpack.c.l.b16 %v683
  %v783 = vunpack.c.h.b16 %v683
  %v784 = vunpack.c.l.b16 %v684
  %v785 = vunpack.c.h.b16 %v684
  %v786 = vunpack.c.l.b16 %v685
  %v787 = vunpack.c.h.b16 %v685
  %v788 = vunpack.c.l.b16 %v686
  %v789 = vunpack.c.h.b16 %v686
  %v790 = vunpack.c.l.b16 %v687
  %v791 = vunpack.c.h.b16 %v687
  %v792 = vunpack.c.l.b16 %v688
  %v793 = vunpack.c.h.b16 %v688
  %v794 = vunpack.c.l.b16 %v689
  %v795 = vunpack.c.h.b16 %v689
  %v796 = vunpack.c.l.b16 %v690
  %v797 = vunpack.c.h.b16 %v690
  %v798 = vunpack.c.l.b16 %v691
  %v799 = vunpack.c.h.b16 %v691
  %v800 = vpack.c.b16 %v738, %v736
  %v801 = vpack.c.b16 %v739, %v737
  %v802 = vpack.c.b16 %v742, %v740
  %v803 = vpack.c.b16 %v743, %v741
  %v804 = vpack.c.b16 %v746, %v744
  %v805 = vpack.c.b16 %v747, %v745
  %v806 = vpack.c.b16 %v750, %v748
  %v807 = vpack.c.b16 %v751, %v749
  %v808 = vpack.c.b16 %v754, %v752
  %v809 = vpack.c.b16 %v755, %v753
  %v810 = vpack.c.b16 %v758, %v756
  %v811 = vpack.c.b16 %v759, %v757
  %v812 = vpack.c.b16 %v762, %v760
  %v813 = vpack.c.b16 %v763, %v761
  %v814 = vpack.c.b16 %v766, %v764
  %v815 = vpack.c.b16 %v767, %v765
  %v816 = vpack.c.b16 %v770, %v768
  %v817 = vpack.c.b16 %v771, %v769
  %v818 = vpack.c.b16 %v774, %v772
  %v819 = vpack.c.b16 %v775, %v773
  %v820 = vpack.c.b16 %v778, %v776
  %v821 = vpack.c.b16 %v779, %v777
  %v822 = vpack.c.b16 %v782, %v780
  %v823 = vpack.c.b16 %v783, %v781
  %v824 = vpack.c.b16 %v786, %v784
  %v825 = vpack.c.b16 %v787, %v785
  %v826 = vpack.c.b16 %v790, %v788
  %v827 = vpack.c.b16 %v791, %v789
  %v828 = vpack.c.b16 %v794, %v792
  %v829 = vpack.c.b16 %v795, %v793
  %v830 = vpack.c.b16 %v798, %v796
  %v831 = vpack.c.b16 %v799, %v797
  %864 = vmatprep.subr.bf16.mxu0 %v815
  %865 = vmatpush1.bf16.msra.mxu0 %v814
  %866 = vmatprep.subr.bf16.mxu0 %v813
  %867 = vmatpush1.bf16.msra.mxu0 %v812
  %868 = vmatprep.subr.bf16.mxu0 %v811
  %869 = vmatpush1.bf16.msra.mxu0 %v810
  %870 = vmatprep.subr.bf16.mxu0 %v809
  %871 = vmatpush1.bf16.msra.mxu0 %v808
  %872 = vmatprep.subr.bf16.mxu0 %v807
  %873 = vmatpush1.bf16.msra.mxu0 %v806
  %874 = vmatprep.subr.bf16.mxu0 %v805
  %875 = vmatpush1.bf16.msra.mxu0 %v804
  %876 = vmatprep.subr.bf16.mxu0 %v803
  %877 = vmatpush1.bf16.msra.mxu0 %v802
  %878 = vmatprep.subr.bf16.mxu0 %v801
  %879 = vmatpush1.bf16.msra.mxu0 %v800
  %880 = vmatprep.subr.bf16.mxu0 %v831
  %881 = vmatpush2.bf16.msra.mxu0 %v830
  %882 = vmatprep.subr.bf16.mxu0 %v829
  %883 = vmatpush2.bf16.msra.mxu0 %v828
  %884 = vmatprep.subr.bf16.mxu0 %v827
  %885 = vmatpush2.bf16.msra.mxu0 %v826
  %886 = vmatprep.subr.bf16.mxu0 %v825
  %887 = vmatpush2.bf16.msra.mxu0 %v824
  %888 = vmatprep.subr.bf16.mxu0 %v823
  %889 = vmatpush2.bf16.msra.mxu0 %v822
  %890 = vmatprep.subr.bf16.mxu0 %v821
  %891 = vmatpush2.bf16.msra.mxu0 %v820
  %892 = vmatprep.subr.bf16.mxu0 %v819
  %893 = vmatpush2.bf16.msra.mxu0 %v818
  %894 = vmatprep.subr.bf16.mxu0 %v817
  %895 = vmatpush2.bf16.msra.mxu0 %v816
  %896 = vmatprep.mubr.bf16.mxu0 %v659
  %897 = vmatmul.mubr.bf16.gmra.mxu0 %v658
  %v898 = vpop.f32.mrf.mxu0
  %v899 = vadd.f32 %v697, %v898
  %v900 = vpop.f32.mrf.mxu0
  %v901 = vadd.f32 %v701, %v900
  %v902 = vpop.f32.mrf.mxu0
  %v903 = vpop.f32.mrf.mxu0
  %904 = vdwg.mxu0
  %v905 = vmin.f32 %v899, 20.0
  %v906 = vmin.f32 %v901, 20.0
  %v907 = vmul.f32 %v905, 1.442695
  %v908 = vpow.pop %v907
  %v909 = vmul.f32 %v906, 1.442695
  %v910 = vpow.pop %v909
  %v911 = vadd.f32 %v908, 2.0
  %v912 = vadd.f32 %v910, 2.0
  %v913 = vmul.f32 %v908, %v911
  %v914 = vmul.f32 %v910, %v912
  %v915 = vmul.f32 %v899, %v913
  %v916 = vmul.f32 %v901, %v914
  %v917 = vadd.f32 %v913, 2.0
  %v918 = vadd.f32 %v914, 2.0
  %v919 = vrcp.pop %v917
  %v920 = vrcp.pop %v918
  %v921 = vmul.f32 %v915, %v919
  %v922 = vmul.f32 %v916, %v920
  %vm923 = vcmp.gt.f32.partialorder %v899, 20.0
  %vm924 = vcmp.gt.f32.partialorder %v901, 20.0
  %v925 = vsel %vm923, %v899, %v921
  %v926 = vsel %vm924, %v901, %v922
  %v927 = vpack.c.bf16 %v925, %v925
  %v928 = vpack.c.bf16 %v926, %v926
  %v929 = vld [vmem:[%s9] sm:$0xf]
  %v930 = vld [vmem:[%s9 + $0x4] sm:$0xf]
  %v931 = vld [vmem:[%s9 + $0x8] sm:$0xf]
  %v932 = vld [vmem:[%s9 + $0xc] sm:$0xf]
  %v933 = vld [vmem:[%s9 + $0x10] sm:$0xf]
  %v934 = vld [vmem:[%s9 + $0x14] sm:$0xf]
  %v935 = vld [vmem:[%s9 + $0x18] sm:$0xf]
  %v936 = vld [vmem:[%s9 + $0x1c] sm:$0xf]
  %v937 = vld [vmem:[%s9 + $0x20] sm:$0xf]
  %v938 = vld [vmem:[%s9 + $0x24] sm:$0xf]
  %v939 = vld [vmem:[%s9 + $0x28] sm:$0xf]
  %v940 = vld [vmem:[%s9 + $0x2c] sm:$0xf]
  %v941 = vld [vmem:[%s9 + $0x30] sm:$0xf]
  %v942 = vld [vmem:[%s9 + $0x34] sm:$0xf]
  %v943 = vld [vmem:[%s9 + $0x38] sm:$0xf]
  %v944 = vld [vmem:[%s9 + $0x3c] sm:$0xf]
  %v945 = vld [vmem:[%s9 + $0x40] sm:$0xf]
  %v946 = vld [vmem:[%s9 + $0x44] sm:$0xf]
  %v947 = vld [vmem:[%s9 + $0x48] sm:$0xf]
  %v948 = vld [vmem:[%s9 + $0x4c] sm:$0xf]
  %v949 = vld [vmem:[%s9 + $0x50] sm:$0xf]
  %v950 = vld [vmem:[%s9 + $0x54] sm:$0xf]
  %v951 = vld [vmem:[%s9 + $0x58] sm:$0xf]
  %v952 = vld [vmem:[%s9 + $0x5c] sm:$0xf]
  %v953 = vld [vmem:[%s9 + $0x60] sm:$0xf]
  %v954 = vld [vmem:[%s9 + $0x64] sm:$0xf]
  %v955 = vld [vmem:[%s9 + $0x68] sm:$0xf]
  %v956 = vld [vmem:[%s9 + $0x6c] sm:$0xf]
  %v957 = vld [vmem:[%s9 + $0x70] sm:$0xf]
  %v958 = vld [vmem:[%s9 + $0x74] sm:$0xf]
  %v959 = vld [vmem:[%s9 + $0x78] sm:$0xf]
  %v960 = vld [vmem:[%s9 + $0x7c] sm:$0xf]
  %v961 = vld [vmem:[%s10] sm:$0x1]
  %v963 = vlaneseq
  %v964 = vshrl.u32 %v963, 7
  %v965 = vsub.s32 0, %v964
  %v966 = vrot.slane %v961, %v965
  %v1000 = vunpack.c.l.b16 %v929
  %v1001 = vunpack.c.l.b16 %v930
  %v1002 = vunpack.c.l.b16 %v931
  %v1003 = vunpack.c.l.b16 %v932
  %v1004 = vunpack.c.l.b16 %v933
  %v1005 = vunpack.c.l.b16 %v934
  %v1006 = vunpack.c.l.b16 %v935
  %v1007 = vunpack.c.l.b16 %v936
  %v1008 = vunpack.c.l.b16 %v937
  %v1009 = vunpack.c.l.b16 %v938
  %v1010 = vunpack.c.l.b16 %v939
  %v1011 = vunpack.c.l.b16 %v940
  %v1012 = vunpack.c.l.b16 %v941
  %v1013 = vunpack.c.l.b16 %v942
  %v1014 = vunpack.c.l.b16 %v943
  %v1015 = vunpack.c.l.b16 %v944
  %v1016 = vunpack.c.l.b16 %v945
  %v1017 = vunpack.c.l.b16 %v946
  %v1018 = vunpack.c.l.b16 %v947
  %v1019 = vunpack.c.l.b16 %v948
  %v1020 = vunpack.c.l.b16 %v949
  %v1021 = vunpack.c.l.b16 %v950
  %v1022 = vunpack.c.l.b16 %v951
  %v1023 = vunpack.c.l.b16 %v952
  %v1024 = vunpack.c.l.b16 %v953
  %v1025 = vunpack.c.l.b16 %v954
  %v1026 = vunpack.c.l.b16 %v955
  %v1027 = vunpack.c.l.b16 %v956
  %v1028 = vunpack.c.l.b16 %v957
  %v1029 = vunpack.c.l.b16 %v958
  %v1030 = vunpack.c.l.b16 %v959
  %v1031 = vunpack.c.l.b16 %v960
  %v1032 = vpack.c.b16 %v1001, %v1000
  %v1033 = vpack.c.b16 %v1003, %v1002
  %v1034 = vpack.c.b16 %v1005, %v1004
  %v1035 = vpack.c.b16 %v1007, %v1006
  %v1036 = vpack.c.b16 %v1009, %v1008
  %v1037 = vpack.c.b16 %v1011, %v1010
  %v1038 = vpack.c.b16 %v1013, %v1012
  %v1039 = vpack.c.b16 %v1015, %v1014
  %v1040 = vpack.c.b16 %v1017, %v1016
  %v1041 = vpack.c.b16 %v1019, %v1018
  %v1042 = vpack.c.b16 %v1021, %v1020
  %v1043 = vpack.c.b16 %v1023, %v1022
  %v1044 = vpack.c.b16 %v1025, %v1024
  %v1045 = vpack.c.b16 %v1027, %v1026
  %v1046 = vpack.c.b16 %v1029, %v1028
  %v1047 = vpack.c.b16 %v1031, %v1030
  %1064 = vmatprep.subr.bf16.mxu0 0
  %1065 = vmatpush1.bf16.msra.mxu0 %v1039
  %1066 = vmatprep.subr.bf16.mxu0 0
  %1067 = vmatpush1.bf16.msra.mxu0 %v1038
  %1068 = vmatprep.subr.bf16.mxu0 0
  %1069 = vmatpush1.bf16.msra.mxu0 %v1037
  %1070 = vmatprep.subr.bf16.mxu0 0
  %1071 = vmatpush1.bf16.msra.mxu0 %v1036
  %1072 = vmatprep.subr.bf16.mxu0 0
  %1073 = vmatpush1.bf16.msra.mxu0 %v1035
  %1074 = vmatprep.subr.bf16.mxu0 0
  %1075 = vmatpush1.bf16.msra.mxu0 %v1034
  %1076 = vmatprep.subr.bf16.mxu0 0
  %1077 = vmatpush1.bf16.msra.mxu0 %v1033
  %1078 = vmatprep.subr.bf16.mxu0 0
  %1079 = vmatpush1.bf16.msra.mxu0 %v1032
  %1080 = vmatprep.subr.bf16.mxu0 0
  %1081 = vmatpush2.bf16.msra.mxu0 %v1047
  %1082 = vmatprep.subr.bf16.mxu0 0
  %1083 = vmatpush2.bf16.msra.mxu0 %v1046
  %1084 = vmatprep.subr.bf16.mxu0 0
  %1085 = vmatpush2.bf16.msra.mxu0 %v1045
  %1086 = vmatprep.subr.bf16.mxu0 0
  %1087 = vmatpush2.bf16.msra.mxu0 %v1044
  %1088 = vmatprep.subr.bf16.mxu0 0
  %1089 = vmatpush2.bf16.msra.mxu0 %v1043
  %1090 = vmatprep.subr.bf16.mxu0 0
  %1091 = vmatpush2.bf16.msra.mxu0 %v1042
  %1092 = vmatprep.subr.bf16.mxu0 0
  %1093 = vmatpush2.bf16.msra.mxu0 %v1041
  %1094 = vmatprep.subr.bf16.mxu0 0
  %1095 = vmatpush2.bf16.msra.mxu0 %v1040
  %1096 = vmatprep.mubr.bf16.mxu0 %v928
  %1097 = vmatmul.mubr.bf16.gmra.mxu0 %v927
  %v1098 = vpop.f32.mrf.mxu0
  %v1099 = vadd.f32 %v966, %v1098
  %v1100 = vpop.f32.mrf.mxu0
  %v1101 = vpop.f32.mrf.mxu0
  %v1102 = vpop.f32.mrf.mxu0
  %1103 = vdwg.mxu0
  %v1104 = vtanh.pop %v1099
  %v1105 = vadd.f32 %v1104, 1.0
  %v1106 = vmul.f32 %v1105, 4.6051702
  %v1107 = vadd.f32 %v1106, -9.2103405
  %v1108 = vmul.f32 %v1107, 0.5
  %v1109 = vmul.f32 %v1108, 1.442695
  %v1110 = vpow.pop %v1109
  %v1111 = vlaneseq
  %v1112 = vand.u32 %v1111, 127
  %vm1113 = vcmp.lt.s32.totalorder %v1112, 2
  %v1114 = vsel %vm1113, %v1104, %v1110
  %vm1115 = vcmask 31744
  %1116 = vst.msk [vmem:[%s11] sm:$0xff] %vm1115, %v1114
  // Predicated region
  $region46: #{push_nn_privileged_actor.1} parent=0 // pred_check
    _
  $region47: #{push_nn_privileged_actor.1} parent=0 // pred_check_branch
    %1118 = sbr.rel (0) target = $region49
  $region48: #{push_nn_privileged_actor.1} parent=0 // pred_region
    _
  $region49: #{push_nn_privileged_actor.1} parent=0 // pred_fallthru
    _
  // Predicated region
  $region50: #{push_nn_privileged_actor.1} parent=0 // pred_check
    _
  $region51: #{push_nn_privileged_actor.1} parent=0 // pred_check_branch
    %1120 = sbr.rel (0) target = $region53
  $region52: #{push_nn_privileged_actor.1} parent=0 // pred_region
    _
  $region53: #{push_nn_privileged_actor.1} parent=0 // pred_fallthru
    _

</llo_original>
